<compile_context>
chip_gen: v5e
topology: v5e:2x2
jax: 0.10.0
libtpu: 0.0.40
codegen_flags: <defaults>
</compile_context>

<pallas_src>
import functools

import jax
import jax.numpy as jnp
from jax import lax
from jax.experimental import pallas as pl
from jax.experimental.pallas import tpu as pltpu

VOCAB = 128       # lane-aligned vocab for the demo
EMBED_DIM = 128   # lane-aligned embedding dim (PyTorch default 100 padded to 128)
BATCH = 64
NUM_NEG = 8
TB = 32           # batch tile -> grid=2 (even, so v7x shards across both TCs)
SEL_W = 16        # K negatives + 1 context, padded to 16 selected rows per batch row
OUT_W = 128       # lane-dense packed output width: [neg(0..K-1) | pos(K) | zeros]


def skipgram_kernel(num_neg, center_idx_ref, sel_idx_ref, in_tab_ref,
                    out_tab_ref, out_ref):
    tb = center_idx_ref.shape[0]
    vocab, d = in_tab_ref.shape
    sel_w = sel_idx_ref.shape[1]
    out_w = out_ref.shape[1]

    # bf16 tables stay bf16 -- fed straight to the MXU (bf16 x bf16 -> f32 acc).
    in_tab = in_tab_ref[...]     # (V, D) bf16
    out_tab = out_tab_ref[...]   # (V, D) bf16

    # --- fused center-embedding gather: bf16 one-hot @ table on the MXU ---
    c_idx = center_idx_ref[...]                                    # (TB, 1) i32
    v_iota = lax.broadcasted_iota(jnp.int32, (tb, vocab), 1)
    onehot_c = (v_iota == c_idx).astype(jnp.bfloat16)              # (TB, V) bf16
    center = jnp.dot(onehot_c, in_tab,
                     preferred_element_type=jnp.float32)           # (TB, D) f32

    # --- fused gather of the K negatives + 1 context rows per batch row:
    #     one (TB*SEL_W, V) @ (V, D) MXU matmul (exact for 0/1 one-hots) ---
    sel = sel_idx_ref[...]                                         # (TB, SEL_W) i32
    v_iota_s = lax.broadcasted_iota(jnp.int32, (tb, sel_w, vocab), 2)
    onehot_s = (v_iota_s == sel[:, :, None]).astype(jnp.bfloat16)  # (TB, SEL_W, V)
    sel_emb = jnp.dot(onehot_s.reshape(tb * sel_w, vocab), out_tab,
                      preferred_element_type=jnp.float32)          # (TB*SEL_W, D) f32

    # --- per-row dot with the center embedding (small f32 VPU mul + reduce) ---
    packed16 = jnp.sum(sel_emb.reshape(tb, sel_w, d) * center[:, None, :],
                       axis=-1)                                    # (TB, SEL_W)

    # Zero padding lanes (> K): lanes 0..K-1 = neg scores, lane K = pos score.
    lane = lax.broadcasted_iota(jnp.int32, (tb, sel_w), 1)
    packed16 = jnp.where(lane <= num_neg, packed16, 0.0)

    # Pad to full lane width -> one wide unmasked store.
    out_ref[...] = jnp.concatenate(
        [packed16, jnp.zeros((tb, out_w - sel_w), jnp.float32)], axis=1)


def skipgram_forward(input_emb, output_emb, center_words, context_words,
                     negative_words, *, tb=TB, sel_w=SEL_W, out_w=OUT_W):
    B = center_words.shape[0]
    K = negative_words.shape[1]
    V, D = input_emb.shape
    assert B % tb == 0, "batch must be a multiple of the batch tile"
    assert K + 1 <= sel_w <= out_w

    # bf16 storage for the tables (halves HBM traffic); MXU accumulates in f32.
    in_tab = input_emb.astype(jnp.bfloat16)
    out_tab = output_emb.astype(jnp.bfloat16)

    center_idx = center_words.astype(jnp.int32)[:, None]            # (B, 1)
    # Packed selection indices: [neg_0..neg_{K-1}, context, 0-pad]  -> (B, SEL_W)
    sel_idx = jnp.concatenate(
        [negative_words.astype(jnp.int32),
         context_words.astype(jnp.int32)[:, None],
         jnp.zeros((B, sel_w - K - 1), jnp.int32)], axis=1)

    # Cost model for the new formulation: one (TB,V)@(V,D) gather + one
    # (TB*SEL_W,V)@(V,D) gather per tile, plus the small elementwise dot.
    flops = B * (2 * V * D * (1 + sel_w) + 2 * sel_w * D)
    bytes_accessed = (2 * V * D * 2          # bf16 tables (fetched once, resident)
                      + B * 4                # center indices
                      + B * sel_w * 4        # packed selection indices
                      + B * out_w * 4)       # packed f32 output

    packed = pl.pallas_call(
        functools.partial(skipgram_kernel, K),
        out_shape=jax.ShapeDtypeStruct((B, out_w), jnp.float32),
        grid_spec=pltpu.PrefetchScalarGridSpec(
            num_scalar_prefetch=0,
            grid=(B // tb,),
            in_specs=[
                pl.BlockSpec((tb, 1), lambda i: (i, 0)),       # center indices
                pl.BlockSpec((tb, sel_w), lambda i: (i, 0)),   # packed sel indices
                pl.BlockSpec((V, D), lambda i: (0, 0)),        # input table (resident)
                pl.BlockSpec((V, D), lambda i: (0, 0)),        # output table (resident)
            ],
            out_specs=pl.BlockSpec((tb, out_w), lambda i: (i, 0)),
        ),
        compiler_params=pltpu.CompilerParams(
            dimension_semantics=("parallel",)),
        cost_estimate=pl.CostEstimate(flops=flops, transcendentals=0,
                                      bytes_accessed=bytes_accessed),
    )(center_idx, sel_idx, in_tab, out_tab)

    positive_score = packed[:, K]      # (B,)
    negative_score = packed[:, :K]     # (B, K)
    return positive_score, negative_score


if __name__ == "__main__":
    key = jax.random.PRNGKey(0)
    k1, k2, k3, k4, k5 = jax.random.split(key, 5)

    # nn.init.uniform_(weight, -0.5/D, 0.5/D), deterministic in-script.
    bound = 0.5 / EMBED_DIM
    input_emb = jax.random.uniform(k1, (VOCAB, EMBED_DIM), jnp.float32,
                                   minval=-bound, maxval=bound)
    output_emb = jax.random.uniform(k2, (VOCAB, EMBED_DIM), jnp.float32,
                                    minval=-bound, maxval=bound)

    center_words = jax.random.randint(k3, (BATCH,), 0, VOCAB, dtype=jnp.int32)
    context_words = jax.random.randint(k4, (BATCH,), 0, VOCAB, dtype=jnp.int32)
    negative_words = jax.random.randint(k5, (BATCH, NUM_NEG), 0, VOCAB,
                                        dtype=jnp.int32)

    fwd = jax.jit(skipgram_forward)
    pos_score, neg_score = fwd(input_emb, output_emb, center_words,
                               context_words, negative_words)
    jax.block_until_ready((pos_score, neg_score))

    # Pure-JAX reference on the same bf16-stored tables (all math in f32).
    in_f32 = input_emb.astype(jnp.bfloat16).astype(jnp.float32)
    out_f32 = output_emb.astype(jnp.bfloat16).astype(jnp.float32)
    ce = in_f32[center_words]
    cte = out_f32[context_words]
    ne = out_f32[negative_words]
    pos_ref = jnp.sum(ce * cte, axis=1)
    neg_ref = jnp.sum(ne * ce[:, None, :], axis=-1)

    assert pos_score.shape == (BATCH,)
    assert neg_score.shape == (BATCH, NUM_NEG)
    assert jnp.allclose(pos_score, pos_ref, atol=1e-5)
    assert jnp.allclose(neg_score, neg_ref, atol=1e-5)

    print("KERNEL_OK")
</pallas_src>

<mosaic_0001>
module attributes {stable_mosaic.version = 11 : i64} {
  func.func @skipgram_kernel(%arg0: i32, %arg1: memref<32x1xi32, #tpu.memory_space<vmem>>, %arg2: memref<32x16xi32, #tpu.memory_space<vmem>>, %arg3: memref<128x128xbf16, #tpu.memory_space<vmem>>, %arg4: memref<128x128xbf16, #tpu.memory_space<vmem>>, %arg5: memref<32x128xf32, #tpu.memory_space<vmem>>) attributes {dimension_semantics = [#tpu.dimension_semantics<parallel>], iteration_bounds = array<i64: 2>, scalar_prefetch = 0 : i64, scratch_operands = 0 : i64, tpu.core_type = #tpu.core_type<tc>, window_params = [{transform_indices = @transform_0, window_bounds = array<i64: 32, 1>}, {transform_indices = @transform_1, window_bounds = array<i64: 32, 16>}, {pipeline_mode = #tpu.pipeline_mode<synchronous>, transform_indices = @transform_2, window_bounds = array<i64: 128, 128>}, {pipeline_mode = #tpu.pipeline_mode<synchronous>, transform_indices = @transform_3, window_bounds = array<i64: 128, 128>}, {transform_indices = @transform_4, window_bounds = array<i64: 32, 128>}]} {
    %c0 = arith.constant 0 : index
    %c0_0 = arith.constant 0 : index
    %0 = vector.load %arg3[%c0, %c0_0] : memref<128x128xbf16, #tpu.memory_space<vmem>>, vector<128x128xbf16>
    %c0_1 = arith.constant 0 : index
    %c0_2 = arith.constant 0 : index
    %1 = vector.load %arg4[%c0_1, %c0_2] : memref<128x128xbf16, #tpu.memory_space<vmem>>, vector<128x128xbf16>
    %c0_3 = arith.constant 0 : index
    %c0_4 = arith.constant 0 : index
    %2 = vector.load %arg1[%c0_3, %c0_4] : memref<32x1xi32, #tpu.memory_space<vmem>>, vector<32x1xi32>
    %3 = tpu.iota {dimensions = array<i32: 1>} : vector<32x128xi32>
    %4 = vector.broadcast %2 : vector<32x1xi32> to vector<32x128xi32>
    %5 = arith.cmpi eq, %3, %4 : vector<32x128xi32>
    %6 = arith.extui %5 : vector<32x128xi1> to vector<32x128xi32>
    %7 = arith.sitofp %6 : vector<32x128xi32> to vector<32x128xf32>
    %8 = arith.truncf %7 : vector<32x128xf32> to vector<32x128xbf16>
    %cst = arith.constant dense<0.000000e+00> : vector<32x128xf32>
    %9 = tpu.matmul %8, %0, %cst {dimension_numbers = #tpu.dot_dimension_numbers<[1], [0], [0], [1], [0, 0, 1, 1], [], []>} : vector<32x128xbf16>, vector<128x128xbf16>, vector<32x128xf32> -> vector<32x128xf32>
    %c0_5 = arith.constant 0 : index
    %c0_6 = arith.constant 0 : index
    %10 = vector.load %arg2[%c0_5, %c0_6] : memref<32x16xi32, #tpu.memory_space<vmem>>, vector<32x16xi32>
    %11 = tpu.iota {dimensions = array<i32: 2>} : vector<32x16x128xi32>
    %12 = vector.shape_cast %10 : vector<32x16xi32> to vector<32x16x1xi32>
    %13 = vector.broadcast %12 : vector<32x16x1xi32> to vector<32x16x128xi32>
    %14 = arith.cmpi eq, %11, %13 : vector<32x16x128xi32>
    %15 = arith.extui %14 : vector<32x16x128xi1> to vector<32x16x128xi32>
    %16 = arith.sitofp %15 : vector<32x16x128xi32> to vector<32x16x128xf32>
    %17 = arith.truncf %16 : vector<32x16x128xf32> to vector<32x16x128xbf16>
    %18 = vector.shape_cast %17 : vector<32x16x128xbf16> to vector<512x128xbf16>
    %cst_7 = arith.constant dense<0.000000e+00> : vector<512x128xf32>
    %19 = tpu.matmul %18, %1, %cst_7 {dimension_numbers = #tpu.dot_dimension_numbers<[1], [0], [0], [1], [0, 0, 1, 1], [], []>} : vector<512x128xbf16>, vector<128x128xbf16>, vector<512x128xf32> -> vector<512x128xf32>
    %20 = vector.shape_cast %19 : vector<512x128xf32> to vector<32x16x128xf32>
    %21 = vector.shape_cast %9 : vector<32x128xf32> to vector<32x1x128xf32>
    %22 = vector.broadcast %21 : vector<32x1x128xf32> to vector<32x16x128xf32>
    %23 = arith.mulf %20, %22 : vector<32x16x128xf32>
    %cst_8 = arith.constant dense<0.000000e+00> : vector<32x16xf32>
    %24 = vector.multi_reduction <add>, %23, %cst_8 [2] : vector<32x16x128xf32> to vector<32x16xf32>
    %25 = tpu.iota {dimensions = array<i32: 1>} : vector<32x16xi32>
    %c8_i32 = arith.constant 8 : i32
    %26 = vector.broadcast %c8_i32 : i32 to vector<32x16xi32>
    %27 = arith.cmpi sle, %25, %26 : vector<32x16xi32>
    %cst_9 = arith.constant 0.000000e+00 : f32
    %28 = vector.broadcast %cst_9 : f32 to vector<32x16xf32>
    %29 = arith.select %27, %24, %28 : vector<32x16xi1>, vector<32x16xf32>
    %cst_10 = arith.constant 0.000000e+00 : f32
    %30 = vector.broadcast %cst_10 : f32 to vector<32x112xf32>
    %31 = tpu.concatenate %29, %30 in 1 : vector<32x16xf32>, vector<32x112xf32> -> vector<32x128xf32>
    %c0_11 = arith.constant 0 : index
    %c0_12 = arith.constant 0 : index
    %32 = vector.load %arg5[%c0_11, %c0_12] : memref<32x128xf32, #tpu.memory_space<vmem>>, vector<32x128xf32>
    tpu.vector_store %arg5[%c0_11, %c0_12], %31 {strides = array<i32>} : memref<32x128xf32, #tpu.memory_space<vmem>>, vector<32x128xf32>,
    return
  }
  func.func @transform_0(%arg0: i32) -> (i32, i32) {
    %c0_i32 = arith.constant 0 : i32
    %c0_i32_0 = arith.constant 0 : i32
    return %arg0, %c0_i32 : i32, i32
  }
  func.func @transform_1(%arg0: i32) -> (i32, i32) {
    %c0_i32 = arith.constant 0 : i32
    %c0_i32_0 = arith.constant 0 : i32
    return %arg0, %c0_i32 : i32, i32
  }
  func.func @transform_2(%arg0: i32) -> (i32, i32) {
    %c0_i32 = arith.constant 0 : i32
    %c0_i32_0 = arith.constant 0 : i32
    %c0_i32_1 = arith.constant 0 : i32
    return %c0_i32, %c0_i32_0 : i32, i32
  }
  func.func @transform_3(%arg0: i32) -> (i32, i32) {
    %c0_i32 = arith.constant 0 : i32
    %c0_i32_0 = arith.constant 0 : i32
    %c0_i32_1 = arith.constant 0 : i32
    return %c0_i32, %c0_i32_0 : i32, i32
  }
  func.func @transform_4(%arg0: i32) -> (i32, i32) {
    %c0_i32 = arith.constant 0 : i32
    %c0_i32_0 = arith.constant 0 : i32
    return %arg0, %c0_i32 : i32, i32
  }
}

</mosaic_0001>

<llo_original>
// kernel: skipgram_forward.1
$region0: #{skipgram_forward.1}
  #allocation0 [shape = 'u32[]', space=smem, size = 0x4, offset = 0x4, fixed_abs, tag = 'smem constant byte address 0x4 - core index']
  #allocation1 [shape = 'u32[72,128]{1,0:T(1,128)}', space=vmem, size = 0x9000, scoped, tag = 'internal scratch']
  %s0 = inlined_call_operand.vmem [shape: s32[64,1], index: 0, kind: input, shape index: {}]
  %s1 = inlined_call_operand.vmem [shape: s32[64,16], index: 1, kind: input, shape index: {}]
  %s2 = inlined_call_operand.vmem [shape: bf16[128,128], index: 2, kind: input, shape index: {}]
  %s3 = inlined_call_operand.vmem [shape: bf16[128,128], index: 3, kind: input, shape index: {}]
  %s4 = inlined_call_operand.vmem [shape: f32[64,128], index: 4, kind: output, shape index: {}]
  %s5 = sld [smem:[#allocation0]]
  $region49: #{skipgram_forward.1} parent=0
    _
  %s7 = ssub.s32 1, %s5
  %s8 = scalar_select 0, %s7, %s5
  loop: start=0, step=1, limit=4
  $region2: #{skipgram_forward.1} parent=0 // loop_pre_header
    _
  $region3: #{skipgram_forward.1} parent=0 // loop_header
    %s10 = sphi 0, %s14
    %p11 = scmp.ge.s32.totalorder %s10, 4
    %s20 = sphi 0, %s22
    %s23 = sphi 0, %s20
    %s24 = sphi 0, %s23
    %s40 = sphi 0, %s24
    %s46 = sphi 0, %s48
    %s49 = sphi 0, %s46
    %s50 = sphi 0, %s49
    %s66 = sphi 0, %s50
    %s70 = sphi 0, %s70
    %s72 = sphi 0, %s70
    %s73 = sphi 0, %s72
    %s87 = sphi 0, %s73
    %s91 = sphi 0, %s91
    %s93 = sphi 0, %s91
    %s94 = sphi 0, %s93
    %s108 = sphi 0, %s94
    %s114 = sphi 0, %s116
    %s117 = sphi 0, %s114
    %s118 = sphi 0, %s117
    %s134 = sphi 0, %s118
  $region4: #{skipgram_forward.1} parent=0 // loop_header_branch
    %13 = sbr.rel (%p11) target = $region8
  $region5: #{skipgram_forward.1} parent=0 // loop_body
    %s15 = ssub.s32 %s10, 1
    %s16 = ssub.s32 %s10, 2
    %s17 = sadd.s32 %s10, 1
    %s18 = ssub.s32 %s10, %s17
    %p19 = scmp.eq.s32.totalorder %s18, 0
    %s21 = sadd.s32 %s20, 1
    %s22 = scalar_select %p19, %s20, %s21
    %p25 = pneg %p19
    %p26 = scmp.eq.s32.totalorder %s10, 1
    %p27 = por %p25, %p26
    %p28 = scmp.ne.s32.totalorder %s20, %s23
    %p29 = scmp.eq.s32.totalorder %s10, 0
    %p30 = por %p28, %p29
    %p31 = scmp.ne.s32.totalorder %s20, %s23
    %p32 = scmp.eq.s32.totalorder %s15, 1
    %p33 = por %p31, %p32
    %p34 = scmp.ne.s32.totalorder %s23, %s24
    %p35 = scmp.eq.s32.totalorder %s15, 0
    %p36 = por %p34, %p35
    %p37 = scmp.ne.s32.totalorder %s23, %s24
    %p38 = scmp.eq.s32.totalorder %s16, 1
    %p39 = por %p37, %p38
    %p41 = scmp.ne.s32.totalorder %s24, %s40
    %p42 = scmp.eq.s32.totalorder %s16, 0
    %p43 = por %p41, %p42
    %s44 = ssub.s32 %s10, %s17
    %p45 = scmp.eq.s32.totalorder %s44, 0
    %s47 = sadd.s32 %s46, 1
    %s48 = scalar_select %p45, %s46, %s47
    %p51 = pneg %p45
    %p52 = scmp.eq.s32.totalorder %s10, 1
    %p53 = por %p51, %p52
    %p54 = scmp.ne.s32.totalorder %s46, %s49
    %p55 = scmp.eq.s32.totalorder %s10, 0
    %p56 = por %p54, %p55
    %p57 = scmp.ne.s32.totalorder %s46, %s49
    %p58 = scmp.eq.s32.totalorder %s15, 1
    %p59 = por %p57, %p58
    %p60 = scmp.ne.s32.totalorder %s49, %s50
    %p61 = scmp.eq.s32.totalorder %s15, 0
    %p62 = por %p60, %p61
    %p63 = scmp.ne.s32.totalorder %s49, %s50
    %p64 = scmp.eq.s32.totalorder %s16, 1
    %p65 = por %p63, %p64
    %p67 = scmp.ne.s32.totalorder %s50, %s66
    %p68 = scmp.eq.s32.totalorder %s16, 0
    %p69 = por %p67, %p68
    %s71 = sadd.s32 %s70, 1
    %p74 = scmp.eq.s32.totalorder %s10, 1
    %p75 = scmp.ne.s32.totalorder %s70, %s72
    %p76 = scmp.eq.s32.totalorder %s10, 0
    %p77 = por %p75, %p76
    %p78 = scmp.ne.s32.totalorder %s70, %s72
    %p79 = scmp.eq.s32.totalorder %s15, 1
    %p80 = por %p78, %p79
    %p81 = scmp.ne.s32.totalorder %s72, %s73
    %p82 = scmp.eq.s32.totalorder %s15, 0
    %p83 = por %p81, %p82
    %p84 = scmp.ne.s32.totalorder %s72, %s73
    %p85 = scmp.eq.s32.totalorder %s16, 1
    %p86 = por %p84, %p85
    %p88 = scmp.ne.s32.totalorder %s73, %s87
    %p89 = scmp.eq.s32.totalorder %s16, 0
    %p90 = por %p88, %p89
    %s92 = sadd.s32 %s91, 1
    %p95 = scmp.eq.s32.totalorder %s10, 1
    %p96 = scmp.ne.s32.totalorder %s91, %s93
    %p97 = scmp.eq.s32.totalorder %s10, 0
    %p98 = por %p96, %p97
    %p99 = scmp.ne.s32.totalorder %s91, %s93
    %p100 = scmp.eq.s32.totalorder %s15, 1
    %p101 = por %p99, %p100
    %p102 = scmp.ne.s32.totalorder %s93, %s94
    %p103 = scmp.eq.s32.totalorder %s15, 0
    %p104 = por %p102, %p103
    %p105 = scmp.ne.s32.totalorder %s93, %s94
    %p106 = scmp.eq.s32.totalorder %s16, 1
    %p107 = por %p105, %p106
    %p109 = scmp.ne.s32.totalorder %s94, %s108
    %p110 = scmp.eq.s32.totalorder %s16, 0
    %p111 = por %p109, %p110
    %s112 = ssub.s32 %s10, %s17
    %p113 = scmp.eq.s32.totalorder %s112, 0
    %s115 = sadd.s32 %s114, 1
    %s116 = scalar_select %p113, %s114, %s115
    %p119 = pneg %p113
    %p120 = scmp.eq.s32.totalorder %s10, 1
    %p121 = por %p119, %p120
    %p122 = scmp.ne.s32.totalorder %s114, %s117
    %p123 = scmp.eq.s32.totalorder %s10, 0
    %p124 = por %p122, %p123
    %p125 = scmp.ne.s32.totalorder %s114, %s117
    %p126 = scmp.eq.s32.totalorder %s15, 1
    %p127 = por %p125, %p126
    %p128 = scmp.ne.s32.totalorder %s117, %s118
    %p129 = scmp.eq.s32.totalorder %s15, 0
    %p130 = por %p128, %p129
    %p131 = scmp.ne.s32.totalorder %s117, %s118
    %p132 = scmp.eq.s32.totalorder %s16, 1
    %p133 = por %p131, %p132
    %p135 = scmp.ne.s32.totalorder %s118, %s134
    %p136 = scmp.eq.s32.totalorder %s16, 0
    %p137 = por %p135, %p136
    %p138 = scmp.le.s32.totalorder 1, %s10
    %p139 = scmp.lt.s32.totalorder %s10, 3
    %p140 = pnand %p138, %p139
    %p141 = pneg %p140
    // Predicated region
    $region9: #{skipgram_forward.1} parent=5 // pred_check
      _
    $region10: #{skipgram_forward.1} parent=5 // pred_check_branch
      %143 = sbr.rel (%p140) target = $region12
    $region11: #{skipgram_forward.1} parent=5 // pred_region
      %s144 = ssub.s32 %s10, 1
      // Predicated region
      $region13: #{skipgram_forward.1} parent=11 // pred_check
        %p145 = pneg %p83
      $region14: #{skipgram_forward.1} parent=11 // pred_check_branch
        %147 = sbr.rel (%p145) target = $region16
      $region15: #{skipgram_forward.1} parent=11 // pred_region
        _
      $region16: #{skipgram_forward.1} parent=11 // pred_fallthru
        _
      // Predicated region
      $region17: #{skipgram_forward.1} parent=11 // pred_check
        %p148 = pneg %p104
      $region18: #{skipgram_forward.1} parent=11 // pred_check_branch
        %150 = sbr.rel (%p148) target = $region20
      $region19: #{skipgram_forward.1} parent=11 // pred_region
        _
      $region20: #{skipgram_forward.1} parent=11 // pred_fallthru
        _
    $region12: #{skipgram_forward.1} parent=5 // pred_fallthru
      _
    %p151 = scmp.lt.s32.totalorder %s10, 2
    // Predicated region
    $region21: #{skipgram_forward.1} parent=5 // pred_check
      %p152 = pneg %p151
    $region22: #{skipgram_forward.1} parent=5 // pred_check_branch
      %154 = sbr.rel (%p152) target = $region24
    $region23: #{skipgram_forward.1} parent=5 // pred_region
      // Predicated region
      $region25: #{skipgram_forward.1} parent=23 // pred_check
        %p155 = pneg %p30
      $region26: #{skipgram_forward.1} parent=23 // pred_check_branch
        %157 = sbr.rel (%p155) target = $region28
      $region27: #{skipgram_forward.1} parent=23 // pred_region
        %s158 = smul.u32 4, %s10
        %p159 = scmp.lt.s32.totalorder %s158, 7
        %s160 = scalar_select %p159, %s158, 7
        %s161 = smul.addr %s160, 8
        %s162 = scalar_lea.vmem %s0, %s161
        %s163 = smul.u32 4, %s10
      $region28: #{skipgram_forward.1} parent=23 // pred_fallthru
        _
      // Predicated region
      $region29: #{skipgram_forward.1} parent=23 // pred_check
        %p164 = pneg %p56
      $region30: #{skipgram_forward.1} parent=23 // pred_check_branch
        %166 = sbr.rel (%p164) target = $region32
      $region31: #{skipgram_forward.1} parent=23 // pred_region
        %s167 = smul.u32 4, %s10
        %p168 = scmp.lt.s32.totalorder %s167, 7
        %s169 = scalar_select %p168, %s167, 7
        %s170 = smul.addr %s169, 8
        %s171 = scalar_lea.vmem %s1, %s170
        %s172 = smul.u32 4, %s10
      $region32: #{skipgram_forward.1} parent=23 // pred_fallthru
        _
    $region24: #{skipgram_forward.1} parent=5 // pred_fallthru
      _
    %p173 = scmp.le.s32.totalorder 1, %s10
    %p174 = scmp.lt.s32.totalorder %s10, 3
    %p175 = pnand %p173, %p174
    %p176 = pneg %p175
    // Predicated region
    $region33: #{skipgram_forward.1} parent=5 // pred_check
      _
    $region34: #{skipgram_forward.1} parent=5 // pred_check_branch
      %178 = sbr.rel (%p175) target = $region36
    $region35: #{skipgram_forward.1} parent=5 // pred_region
      %s179 = ssub.s32 %s10, 1
      %s180 = smul.u32 4, %s15
      %p181 = scmp.lt.s32.totalorder %s180, 7
      %s182 = scalar_select %p181, %s180, 7
      %s183 = smul.addr %s182, 8
      %s184 = scalar_lea.vmem %s0, %s183
      %p185 = pneg %p36
      %p186 = pneg %p33
      %s187 = smul.u32 4, %s15
      %p188 = scmp.lt.s32.totalorder %s187, 7
      %s189 = scalar_select %p188, %s187, 7
      %s190 = smul.addr %s189, 8
      %s191 = scalar_lea.vmem %s1, %s190
      %p192 = pneg %p62
      %p193 = pneg %p59
      %p194 = pneg %p83
      %p195 = pneg %p80
      %p196 = pneg %p104
      %p197 = pneg %p101
      %p198 = pneg %p130
      %p199 = pneg %p127
      %s200 = smul.u32 4, %s15
      %p201 = scmp.lt.s32.totalorder %s200, 7
      %s202 = scalar_select %p201, %s200, 7
      %s203 = smul.addr %s202, 8
      %s204 = scalar_lea.vmem %s4, %s203
      %s205 = smul.u32 4, %s15
      %p206 = scmp.lt.s32.totalorder %s205, 7
      %s207 = scalar_select %p206, %s205, 7
      %s208 = smul.addr %s207, 8
      %s209 = scalar_lea.vmem %s0, %s208
      %s210 = smul.u32 4, %s15
      %s211 = smul.u32 4, %s15
      %p212 = scmp.lt.s32.totalorder %s211, 7
      %s213 = scalar_select %p212, %s211, 7
      %s214 = smul.addr %s213, 8
      %s215 = scalar_lea.vmem %s1, %s214
      %s216 = smul.u32 4, %s15
      %s217 = smul.u32 4, %s15
      %p218 = scmp.lt.s32.totalorder %s217, 7
      %s219 = scalar_select %p218, %s217, 7
      %s220 = smul.addr %s219, 8
      %s221 = scalar_lea.vmem %s4, %s220
      %s222 = smul.u32 4, %s15
      %v223 = vld [vmem:[%s2] sm:$0xf]
      %v224 = vld [vmem:[%s2 + $0x4] sm:$0xf]
      %v225 = vld [vmem:[%s2 + $0x8] sm:$0xf]
      %v226 = vld [vmem:[%s2 + $0xc] sm:$0xf]
      %v227 = vld [vmem:[%s2 + $0x10] sm:$0xf]
      %v228 = vld [vmem:[%s2 + $0x14] sm:$0xf]
      %v229 = vld [vmem:[%s2 + $0x18] sm:$0xf]
      %v230 = vld [vmem:[%s2 + $0x1c] sm:$0xf]
      %v231 = vld [vmem:[%s2 + $0x20] sm:$0xf]
      %v232 = vld [vmem:[%s2 + $0x24] sm:$0xf]
      %v233 = vld [vmem:[%s2 + $0x28] sm:$0xf]
      %v234 = vld [vmem:[%s2 + $0x2c] sm:$0xf]
      %v235 = vld [vmem:[%s2 + $0x30] sm:$0xf]
      %v236 = vld [vmem:[%s2 + $0x34] sm:$0xf]
      %v237 = vld [vmem:[%s2 + $0x38] sm:$0xf]
      %v238 = vld [vmem:[%s2 + $0x3c] sm:$0xf]
      %v239 = vld [vmem:[%s3] sm:$0xf]
      %v240 = vld [vmem:[%s3 + $0x4] sm:$0xf]
      %v241 = vld [vmem:[%s3 + $0x8] sm:$0xf]
      %v242 = vld [vmem:[%s3 + $0xc] sm:$0xf]
      %v243 = vld [vmem:[%s3 + $0x10] sm:$0xf]
      %v244 = vld [vmem:[%s3 + $0x14] sm:$0xf]
      %v245 = vld [vmem:[%s3 + $0x18] sm:$0xf]
      %v246 = vld [vmem:[%s3 + $0x1c] sm:$0xf]
      %v247 = vld [vmem:[%s3 + $0x20] sm:$0xf]
      %v248 = vld [vmem:[%s3 + $0x24] sm:$0xf]
      %v249 = vld [vmem:[%s3 + $0x28] sm:$0xf]
      %v250 = vld [vmem:[%s3 + $0x2c] sm:$0xf]
      %v251 = vld [vmem:[%s3 + $0x30] sm:$0xf]
      %v252 = vld [vmem:[%s3 + $0x34] sm:$0xf]
      %v253 = vld [vmem:[%s3 + $0x38] sm:$0xf]
      %v254 = vld [vmem:[%s3 + $0x3c] sm:$0xf]
      %v255 = vld [vmem:[%s209] sm:$0xff]
      %v256 = vld [vmem:[%s209 + $0x8] sm:$0xff]
      %v257 = vld [vmem:[%s209 + $0x10] sm:$0xff]
      %v258 = vld [vmem:[%s209 + $0x18] sm:$0xff]
      %v259 = vlaneseq
      %v260 = vand.u32 %v259, 127
      %261 = vset.pattern.permute.xlu0 0
      %262 = vperm.xlu0 %261, %v255
      %v263 = vpop.permute.xlu0 %262
      %264 = vset.pattern.permute.xlu0 0
      %265 = vperm.xlu0 %264, %v256
      %v266 = vpop.permute.xlu0 %265
      %267 = vset.pattern.permute.xlu0 0
      %268 = vperm.xlu0 %267, %v257
      %v269 = vpop.permute.xlu0 %268
      %270 = vset.pattern.permute.xlu0 0
      %271 = vperm.xlu0 %270, %v258
      %v272 = vpop.permute.xlu0 %271
      %vm273 = vcmp.eq.s32.totalorder %v260, %v263
      %vm274 = vcmp.eq.s32.totalorder %v260, %v266
      %vm275 = vcmp.eq.s32.totalorder %v260, %v269
      %vm276 = vcmp.eq.s32.totalorder %v260, %v272
      %v277 = vsel %vm273, 1, 0
      %v278 = vsel %vm274, 1, 0
      %v279 = vsel %vm275, 1, 0
      %v280 = vsel %vm276, 1, 0
      %v281 = vcvt.s32.f32 %v277
      %v282 = vcvt.s32.f32 %v278
      %v283 = vcvt.s32.f32 %v279
      %v284 = vcvt.s32.f32 %v280
      %v285 = vpack.c.bf16 %v282, %v281
      %v286 = vpack.c.bf16 %v284, %v283
      %v303 = vunpack.c.l.b16 %v223
      %v304 = vunpack.c.l.b16 %v224
      %v305 = vunpack.c.l.b16 %v225
      %v306 = vunpack.c.l.b16 %v226
      %v307 = vunpack.c.l.b16 %v227
      %v308 = vunpack.c.l.b16 %v228
      %v309 = vunpack.c.l.b16 %v229
      %v310 = vunpack.c.l.b16 %v230
      %v311 = vunpack.c.l.b16 %v231
      %v312 = vunpack.c.l.b16 %v232
      %v313 = vunpack.c.l.b16 %v233
      %v314 = vunpack.c.l.b16 %v234
      %v315 = vunpack.c.l.b16 %v235
      %v316 = vunpack.c.l.b16 %v236
      %v317 = vunpack.c.l.b16 %v237
      %v318 = vunpack.c.l.b16 %v238
      %v319 = vpack.c.b16 %v304, %v303
      %v320 = vpack.c.b16 %v306, %v305
      %v321 = vpack.c.b16 %v308, %v307
      %v322 = vpack.c.b16 %v310, %v309
      %v323 = vpack.c.b16 %v312, %v311
      %v324 = vpack.c.b16 %v314, %v313
      %v325 = vpack.c.b16 %v316, %v315
      %v326 = vpack.c.b16 %v318, %v317
      %335 = vmatpush.bf16.msra.mxu0 %v326
      %336 = vmatpush.bf16.msra.mxu0 %v325
      %337 = vmatpush.bf16.msra.mxu0 %v324
      %338 = vmatpush.bf16.msra.mxu0 %v323
      %339 = vmatpush.bf16.msra.mxu0 %v322
      %340 = vmatpush.bf16.msra.mxu0 %v321
      %341 = vmatpush.bf16.msra.mxu0 %v320
      %342 = vmatpush.bf16.msra.mxu0 %v319
      %343 = vmatmul.bf16.gmra.mxu0 %v285
      %v344 = vpop.f32.mrf.mxu0
      %v345 = vadd.f32 0.0, %v344
      %v346 = vpop.f32.mrf.mxu0
      %v347 = vadd.f32 0.0, %v346
      %348 = vmatmul.bf16.gmra.mxu0 %v286
      %v349 = vpop.f32.mrf.mxu0
      %v350 = vadd.f32 0.0, %v349
      %v351 = vpop.f32.mrf.mxu0
      %v352 = vadd.f32 0.0, %v351
      %353 = vdwg.mxu0
      %v354 = vld [vmem:[%s215] sm:$0xff]
      %v355 = vld [vmem:[%s215 + $0x8] sm:$0xff]
      %v356 = vld [vmem:[%s215 + $0x10] sm:$0xff]
      %v357 = vld [vmem:[%s215 + $0x18] sm:$0xff]
      %v358 = vperm.slane %v354, 0
      %v359 = vlaneseq
      %v360 = vshrl.u32 %v359, 7
      %362 = vset.pattern.permute.xlu0 %v360
      %363 = vperm.xlu0 %362, %v358
      %v364 = vpop.permute.xlu0 %363
      %v365 = vlaneseq
      %v366 = vshrl.u32 %v365, 7
      %v367 = vadd.s32 %v366, 8
      %368 = vset.pattern.permute.xlu0 %v367
      %369 = vperm.xlu0 %368, %v358
      %v370 = vpop.permute.xlu0 %369
      %v371 = vperm.slane %v354, 1
      %v372 = vlaneseq
      %v373 = vshrl.u32 %v372, 7
      %375 = vset.pattern.permute.xlu0 %v373
      %376 = vperm.xlu0 %375, %v371
      %v377 = vpop.permute.xlu0 %376
      %v378 = vlaneseq
      %v379 = vshrl.u32 %v378, 7
      %v380 = vadd.s32 %v379, 8
      %381 = vset.pattern.permute.xlu0 %v380
      %382 = vperm.xlu0 %381, %v371
      %v383 = vpop.permute.xlu0 %382
      %v384 = vperm.slane %v354, 2
      %v385 = vlaneseq
      %v386 = vshrl.u32 %v385, 7
      %388 = vset.pattern.permute.xlu0 %v386
      %389 = vperm.xlu0 %388, %v384
      %v390 = vpop.permute.xlu0 %389
      %v391 = vlaneseq
      %v392 = vshrl.u32 %v391, 7
      %v393 = vadd.s32 %v392, 8
      %394 = vset.pattern.permute.xlu0 %v393
      %395 = vperm.xlu0 %394, %v384
      %v396 = vpop.permute.xlu0 %395
      %v397 = vperm.slane %v354, 3
      %v398 = vlaneseq
      %v399 = vshrl.u32 %v398, 7
      %401 = vset.pattern.permute.xlu0 %v399
      %402 = vperm.xlu0 %401, %v397
      %v403 = vpop.permute.xlu0 %402
      %v404 = vlaneseq
      %v405 = vshrl.u32 %v404, 7
      %v406 = vadd.s32 %v405, 8
      %407 = vset.pattern.permute.xlu0 %v406
      %408 = vperm.xlu0 %407, %v397
      %v409 = vpop.permute.xlu0 %408
      %v410 = vperm.slane %v354, 4
      %v411 = vlaneseq
      %v412 = vshrl.u32 %v411, 7
      %414 = vset.pattern.permute.xlu0 %v412
      %415 = vperm.xlu0 %414, %v410
      %v416 = vpop.permute.xlu0 %415
      %v417 = vlaneseq
      %v418 = vshrl.u32 %v417, 7
      %v419 = vadd.s32 %v418, 8
      %420 = vset.pattern.permute.xlu0 %v419
      %421 = vperm.xlu0 %420, %v410
      %v422 = vpop.permute.xlu0 %421
      %v423 = vperm.slane %v354, 5
      %v424 = vlaneseq
      %v425 = vshrl.u32 %v424, 7
      %427 = vset.pattern.permute.xlu0 %v425
      %428 = vperm.xlu0 %427, %v423
      %v429 = vpop.permute.xlu0 %428
      %v430 = vlaneseq
      %v431 = vshrl.u32 %v430, 7
      %v432 = vadd.s32 %v431, 8
      %433 = vset.pattern.permute.xlu0 %v432
      %434 = vperm.xlu0 %433, %v423
      %v435 = vpop.permute.xlu0 %434
      %v436 = vperm.slane %v354, 6
      %v437 = vlaneseq
      %v438 = vshrl.u32 %v437, 7
      %440 = vset.pattern.permute.xlu0 %v438
      %441 = vperm.xlu0 %440, %v436
      %v442 = vpop.permute.xlu0 %441
      %v443 = vlaneseq
      %v444 = vshrl.u32 %v443, 7
      %v445 = vadd.s32 %v444, 8
      %446 = vset.pattern.permute.xlu0 %v445
      %447 = vperm.xlu0 %446, %v436
      %v448 = vpop.permute.xlu0 %447
      %v449 = vperm.slane %v354, 7
      %v450 = vlaneseq
      %v451 = vshrl.u32 %v450, 7
      %453 = vset.pattern.permute.xlu0 %v451
      %454 = vperm.xlu0 %453, %v449
      %v455 = vpop.permute.xlu0 %454
      %v456 = vlaneseq
      %v457 = vshrl.u32 %v456, 7
      %v458 = vadd.s32 %v457, 8
      %459 = vset.pattern.permute.xlu0 %v458
      %460 = vperm.xlu0 %459, %v449
      %v461 = vpop.permute.xlu0 %460
      %v462 = vperm.slane %v355, 0
      %v463 = vlaneseq
      %v464 = vshrl.u32 %v463, 7
      %466 = vset.pattern.permute.xlu0 %v464
      %467 = vperm.xlu0 %466, %v462
      %v468 = vpop.permute.xlu0 %467
      %v469 = vlaneseq
      %v470 = vshrl.u32 %v469, 7
      %v471 = vadd.s32 %v470, 8
      %472 = vset.pattern.permute.xlu0 %v471
      %473 = vperm.xlu0 %472, %v462
      %v474 = vpop.permute.xlu0 %473
      %v475 = vperm.slane %v355, 1
      %v476 = vlaneseq
      %v477 = vshrl.u32 %v476, 7
      %479 = vset.pattern.permute.xlu0 %v477
      %480 = vperm.xlu0 %479, %v475
      %v481 = vpop.permute.xlu0 %480
      %v482 = vlaneseq
      %v483 = vshrl.u32 %v482, 7
      %v484 = vadd.s32 %v483, 8
      %485 = vset.pattern.permute.xlu0 %v484
      %486 = vperm.xlu0 %485, %v475
      %v487 = vpop.permute.xlu0 %486
      %v488 = vperm.slane %v355, 2
      %v489 = vlaneseq
      %v490 = vshrl.u32 %v489, 7
      %492 = vset.pattern.permute.xlu0 %v490
      %493 = vperm.xlu0 %492, %v488
      %v494 = vpop.permute.xlu0 %493
      %v495 = vlaneseq
      %v496 = vshrl.u32 %v495, 7
      %v497 = vadd.s32 %v496, 8
      %498 = vset.pattern.permute.xlu0 %v497
      %499 = vperm.xlu0 %498, %v488
      %v500 = vpop.permute.xlu0 %499
      %v501 = vperm.slane %v355, 3
      %v502 = vlaneseq
      %v503 = vshrl.u32 %v502, 7
      %505 = vset.pattern.permute.xlu0 %v503
      %506 = vperm.xlu0 %505, %v501
      %v507 = vpop.permute.xlu0 %506
      %v508 = vlaneseq
      %v509 = vshrl.u32 %v508, 7
      %v510 = vadd.s32 %v509, 8
      %511 = vset.pattern.permute.xlu0 %v510
      %512 = vperm.xlu0 %511, %v501
      %v513 = vpop.permute.xlu0 %512
      %v514 = vperm.slane %v355, 4
      %v515 = vlaneseq
      %v516 = vshrl.u32 %v515, 7
      %518 = vset.pattern.permute.xlu0 %v516
      %519 = vperm.xlu0 %518, %v514
      %v520 = vpop.permute.xlu0 %519
      %v521 = vlaneseq
      %v522 = vshrl.u32 %v521, 7
      %v523 = vadd.s32 %v522, 8
      %524 = vset.pattern.permute.xlu0 %v523
      %525 = vperm.xlu0 %524, %v514
      %v526 = vpop.permute.xlu0 %525
      %v527 = vperm.slane %v355, 5
      %v528 = vlaneseq
      %v529 = vshrl.u32 %v528, 7
      %531 = vset.pattern.permute.xlu0 %v529
      %532 = vperm.xlu0 %531, %v527
      %v533 = vpop.permute.xlu0 %532
      %v534 = vlaneseq
      %v535 = vshrl.u32 %v534, 7
      %v536 = vadd.s32 %v535, 8
      %537 = vset.pattern.permute.xlu0 %v536
      %538 = vperm.xlu0 %537, %v527
      %v539 = vpop.permute.xlu0 %538
      %v540 = vperm.slane %v355, 6
      %v541 = vlaneseq
      %v542 = vshrl.u32 %v541, 7
      %544 = vset.pattern.permute.xlu0 %v542
      %545 = vperm.xlu0 %544, %v540
      %v546 = vpop.permute.xlu0 %545
      %v547 = vlaneseq
      %v548 = vshrl.u32 %v547, 7
      %v549 = vadd.s32 %v548, 8
      %550 = vset.pattern.permute.xlu0 %v549
      %551 = vperm.xlu0 %550, %v540
      %v552 = vpop.permute.xlu0 %551
      %v553 = vperm.slane %v355, 7
      %v554 = vlaneseq
      %v555 = vshrl.u32 %v554, 7
      %557 = vset.pattern.permute.xlu0 %v555
      %558 = vperm.xlu0 %557, %v553
      %v559 = vpop.permute.xlu0 %558
      %v560 = vlaneseq
      %v561 = vshrl.u32 %v560, 7
      %v562 = vadd.s32 %v561, 8
      %563 = vset.pattern.permute.xlu0 %v562
      %564 = vperm.xlu0 %563, %v553
      %v565 = vpop.permute.xlu0 %564
      %v566 = vperm.slane %v356, 0
      %v567 = vlaneseq
      %v568 = vshrl.u32 %v567, 7
      %570 = vset.pattern.permute.xlu0 %v568
      %571 = vperm.xlu0 %570, %v566
      %v572 = vpop.permute.xlu0 %571
      %v573 = vlaneseq
      %v574 = vshrl.u32 %v573, 7
      %v575 = vadd.s32 %v574, 8
      %576 = vset.pattern.permute.xlu0 %v575
      %577 = vperm.xlu0 %576, %v566
      %v578 = vpop.permute.xlu0 %577
      %v579 = vperm.slane %v356, 1
      %v580 = vlaneseq
      %v581 = vshrl.u32 %v580, 7
      %583 = vset.pattern.permute.xlu0 %v581
      %584 = vperm.xlu0 %583, %v579
      %v585 = vpop.permute.xlu0 %584
      %v586 = vlaneseq
      %v587 = vshrl.u32 %v586, 7
      %v588 = vadd.s32 %v587, 8
      %589 = vset.pattern.permute.xlu0 %v588
      %590 = vperm.xlu0 %589, %v579
      %v591 = vpop.permute.xlu0 %590
      %v592 = vperm.slane %v356, 2
      %v593 = vlaneseq
      %v594 = vshrl.u32 %v593, 7
      %596 = vset.pattern.permute.xlu0 %v594
      %597 = vperm.xlu0 %596, %v592
      %v598 = vpop.permute.xlu0 %597
      %v599 = vlaneseq
      %v600 = vshrl.u32 %v599, 7
      %v601 = vadd.s32 %v600, 8
      %602 = vset.pattern.permute.xlu0 %v601
      %603 = vperm.xlu0 %602, %v592
      %v604 = vpop.permute.xlu0 %603
      %v605 = vperm.slane %v356, 3
      %v606 = vlaneseq
      %v607 = vshrl.u32 %v606, 7
      %609 = vset.pattern.permute.xlu0 %v607
      %610 = vperm.xlu0 %609, %v605
      %v611 = vpop.permute.xlu0 %610
      %v612 = vlaneseq
      %v613 = vshrl.u32 %v612, 7
      %v614 = vadd.s32 %v613, 8
      %615 = vset.pattern.permute.xlu0 %v614
      %616 = vperm.xlu0 %615, %v605
      %v617 = vpop.permute.xlu0 %616
      %v618 = vperm.slane %v356, 4
      %v619 = vlaneseq
      %v620 = vshrl.u32 %v619, 7
      %622 = vset.pattern.permute.xlu0 %v620
      %623 = vperm.xlu0 %622, %v618
      %v624 = vpop.permute.xlu0 %623
      %v625 = vlaneseq
      %v626 = vshrl.u32 %v625, 7
      %v627 = vadd.s32 %v626, 8
      %628 = vset.pattern.permute.xlu0 %v627
      %629 = vperm.xlu0 %628, %v618
      %v630 = vpop.permute.xlu0 %629
      %v631 = vperm.slane %v356, 5
      %v632 = vlaneseq
      %v633 = vshrl.u32 %v632, 7
      %635 = vset.pattern.permute.xlu0 %v633
      %636 = vperm.xlu0 %635, %v631
      %v637 = vpop.permute.xlu0 %636
      %v638 = vlaneseq
      %v639 = vshrl.u32 %v638, 7
      %v640 = vadd.s32 %v639, 8
      %641 = vset.pattern.permute.xlu0 %v640
      %642 = vperm.xlu0 %641, %v631
      %v643 = vpop.permute.xlu0 %642
      %v644 = vperm.slane %v356, 6
      %v645 = vlaneseq
      %v646 = vshrl.u32 %v645, 7
      %648 = vset.pattern.permute.xlu0 %v646
      %649 = vperm.xlu0 %648, %v644
      %v650 = vpop.permute.xlu0 %649
      %v651 = vlaneseq
      %v652 = vshrl.u32 %v651, 7
      %v653 = vadd.s32 %v652, 8
      %654 = vset.pattern.permute.xlu0 %v653
      %655 = vperm.xlu0 %654, %v644
      %v656 = vpop.permute.xlu0 %655
      %v657 = vperm.slane %v356, 7
      %v658 = vlaneseq
      %v659 = vshrl.u32 %v658, 7
      %661 = vset.pattern.permute.xlu0 %v659
      %662 = vperm.xlu0 %661, %v657
      %v663 = vpop.permute.xlu0 %662
      %v664 = vlaneseq
      %v665 = vshrl.u32 %v664, 7
      %v666 = vadd.s32 %v665, 8
      %667 = vset.pattern.permute.xlu0 %v666
      %668 = vperm.xlu0 %667, %v657
      %v669 = vpop.permute.xlu0 %668
      %v670 = vperm.slane %v357, 0
      %v671 = vlaneseq
      %v672 = vshrl.u32 %v671, 7
      %674 = vset.pattern.permute.xlu0 %v672
      %675 = vperm.xlu0 %674, %v670
      %v676 = vpop.permute.xlu0 %675
      %v677 = vlaneseq
      %v678 = vshrl.u32 %v677, 7
      %v679 = vadd.s32 %v678, 8
      %680 = vset.pattern.permute.xlu0 %v679
      %681 = vperm.xlu0 %680, %v670
      %v682 = vpop.permute.xlu0 %681
      %v683 = vperm.slane %v357, 1
      %v684 = vlaneseq
      %v685 = vshrl.u32 %v684, 7
      %687 = vset.pattern.permute.xlu0 %v685
      %688 = vperm.xlu0 %687, %v683
      %v689 = vpop.permute.xlu0 %688
      %v690 = vlaneseq
      %v691 = vshrl.u32 %v690, 7
      %v692 = vadd.s32 %v691, 8
      %693 = vset.pattern.permute.xlu0 %v692
      %694 = vperm.xlu0 %693, %v683
      %v695 = vpop.permute.xlu0 %694
      %v696 = vperm.slane %v357, 2
      %v697 = vlaneseq
      %v698 = vshrl.u32 %v697, 7
      %700 = vset.pattern.permute.xlu0 %v698
      %701 = vperm.xlu0 %700, %v696
      %v702 = vpop.permute.xlu0 %701
      %v703 = vlaneseq
      %v704 = vshrl.u32 %v703, 7
      %v705 = vadd.s32 %v704, 8
      %706 = vset.pattern.permute.xlu0 %v705
      %707 = vperm.xlu0 %706, %v696
      %v708 = vpop.permute.xlu0 %707
      %v709 = vperm.slane %v357, 3
      %v710 = vlaneseq
      %v711 = vshrl.u32 %v710, 7
      %713 = vset.pattern.permute.xlu0 %v711
      %714 = vperm.xlu0 %713, %v709
      %v715 = vpop.permute.xlu0 %714
      %v716 = vlaneseq
      %v717 = vshrl.u32 %v716, 7
      %v718 = vadd.s32 %v717, 8
      %719 = vset.pattern.permute.xlu0 %v718
      %720 = vperm.xlu0 %719, %v709
      %v721 = vpop.permute.xlu0 %720
      %v722 = vperm.slane %v357, 4
      %v723 = vlaneseq
      %v724 = vshrl.u32 %v723, 7
      %726 = vset.pattern.permute.xlu0 %v724
      %727 = vperm.xlu0 %726, %v722
      %v728 = vpop.permute.xlu0 %727
      %v729 = vlaneseq
      %v730 = vshrl.u32 %v729, 7
      %v731 = vadd.s32 %v730, 8
      %732 = vset.pattern.permute.xlu0 %v731
      %733 = vperm.xlu0 %732, %v722
      %v734 = vpop.permute.xlu0 %733
      %v735 = vperm.slane %v357, 5
      %v736 = vlaneseq
      %v737 = vshrl.u32 %v736, 7
      %739 = vset.pattern.permute.xlu0 %v737
      %740 = vperm.xlu0 %739, %v735
      %v741 = vpop.permute.xlu0 %740
      %v742 = vlaneseq
      %v743 = vshrl.u32 %v742, 7
      %v744 = vadd.s32 %v743, 8
      %745 = vset.pattern.permute.xlu0 %v744
      %746 = vperm.xlu0 %745, %v735
      %v747 = vpop.permute.xlu0 %746
      %v748 = vperm.slane %v357, 6
      %v749 = vlaneseq
      %v750 = vshrl.u32 %v749, 7
      %752 = vset.pattern.permute.xlu0 %v750
      %753 = vperm.xlu0 %752, %v748
      %v754 = vpop.permute.xlu0 %753
      %v755 = vlaneseq
      %v756 = vshrl.u32 %v755, 7
      %v757 = vadd.s32 %v756, 8
      %758 = vset.pattern.permute.xlu0 %v757
      %759 = vperm.xlu0 %758, %v748
      %v760 = vpop.permute.xlu0 %759
      %v761 = vperm.slane %v357, 7
      %v762 = vlaneseq
      %v763 = vshrl.u32 %v762, 7
      %765 = vset.pattern.permute.xlu0 %v763
      %766 = vperm.xlu0 %765, %v761
      %v767 = vpop.permute.xlu0 %766
      %v768 = vlaneseq
      %v769 = vshrl.u32 %v768, 7
      %v770 = vadd.s32 %v769, 8
      %771 = vset.pattern.permute.xlu0 %v770
      %772 = vperm.xlu0 %771, %v761
      %v773 = vpop.permute.xlu0 %772
      %vm774 = vcmp.eq.s32.totalorder %v260, %v364
      %vm775 = vcmp.eq.s32.totalorder %v260, %v370
      %vm776 = vcmp.eq.s32.totalorder %v260, %v377
      %vm777 = vcmp.eq.s32.totalorder %v260, %v383
      %vm778 = vcmp.eq.s32.totalorder %v260, %v390
      %vm779 = vcmp.eq.s32.totalorder %v260, %v396
      %vm780 = vcmp.eq.s32.totalorder %v260, %v403
      %vm781 = vcmp.eq.s32.totalorder %v260, %v409
      %vm782 = vcmp.eq.s32.totalorder %v260, %v416
      %vm783 = vcmp.eq.s32.totalorder %v260, %v422
      %vm784 = vcmp.eq.s32.totalorder %v260, %v429
      %vm785 = vcmp.eq.s32.totalorder %v260, %v435
      %vm786 = vcmp.eq.s32.totalorder %v260, %v442
      %vm787 = vcmp.eq.s32.totalorder %v260, %v448
      %vm788 = vcmp.eq.s32.totalorder %v260, %v455
      %vm789 = vcmp.eq.s32.totalorder %v260, %v461
      %vm790 = vcmp.eq.s32.totalorder %v260, %v468
      %vm791 = vcmp.eq.s32.totalorder %v260, %v474
      %vm792 = vcmp.eq.s32.totalorder %v260, %v481
      %vm793 = vcmp.eq.s32.totalorder %v260, %v487
      %vm794 = vcmp.eq.s32.totalorder %v260, %v494
      %vm795 = vcmp.eq.s32.totalorder %v260, %v500
      %vm796 = vcmp.eq.s32.totalorder %v260, %v507
      %vm797 = vcmp.eq.s32.totalorder %v260, %v513
      %vm798 = vcmp.eq.s32.totalorder %v260, %v520
      %vm799 = vcmp.eq.s32.totalorder %v260, %v526
      %vm800 = vcmp.eq.s32.totalorder %v260, %v533
      %vm801 = vcmp.eq.s32.totalorder %v260, %v539
      %vm802 = vcmp.eq.s32.totalorder %v260, %v546
      %vm803 = vcmp.eq.s32.totalorder %v260, %v552
      %vm804 = vcmp.eq.s32.totalorder %v260, %v559
      %vm805 = vcmp.eq.s32.totalorder %v260, %v565
      %vm806 = vcmp.eq.s32.totalorder %v260, %v572
      %vm807 = vcmp.eq.s32.totalorder %v260, %v578
      %vm808 = vcmp.eq.s32.totalorder %v260, %v585
      %vm809 = vcmp.eq.s32.totalorder %v260, %v591
      %vm810 = vcmp.eq.s32.totalorder %v260, %v598
      %vm811 = vcmp.eq.s32.totalorder %v260, %v604
      %vm812 = vcmp.eq.s32.totalorder %v260, %v611
      %vm813 = vcmp.eq.s32.totalorder %v260, %v617
      %vm814 = vcmp.eq.s32.totalorder %v260, %v624
      %vm815 = vcmp.eq.s32.totalorder %v260, %v630
      %vm816 = vcmp.eq.s32.totalorder %v260, %v637
      %vm817 = vcmp.eq.s32.totalorder %v260, %v643
      %vm818 = vcmp.eq.s32.totalorder %v260, %v650
      %vm819 = vcmp.eq.s32.totalorder %v260, %v656
      %vm820 = vcmp.eq.s32.totalorder %v260, %v663
      %vm821 = vcmp.eq.s32.totalorder %v260, %v669
      %vm822 = vcmp.eq.s32.totalorder %v260, %v676
      %vm823 = vcmp.eq.s32.totalorder %v260, %v682
      %vm824 = vcmp.eq.s32.totalorder %v260, %v689
      %vm825 = vcmp.eq.s32.totalorder %v260, %v695
      %vm826 = vcmp.eq.s32.totalorder %v260, %v702
      %vm827 = vcmp.eq.s32.totalorder %v260, %v708
      %vm828 = vcmp.eq.s32.totalorder %v260, %v715
      %vm829 = vcmp.eq.s32.totalorder %v260, %v721
      %vm830 = vcmp.eq.s32.totalorder %v260, %v728
      %vm831 = vcmp.eq.s32.totalorder %v260, %v734
      %vm832 = vcmp.eq.s32.totalorder %v260, %v741
      %vm833 = vcmp.eq.s32.totalorder %v260, %v747
      %vm834 = vcmp.eq.s32.totalorder %v260, %v754
      %vm835 = vcmp.eq.s32.totalorder %v260, %v760
      %vm836 = vcmp.eq.s32.totalorder %v260, %v767
      %vm837 = vcmp.eq.s32.totalorder %v260, %v773
      %v838 = vsel %vm774, 1, 0
      %v839 = vsel %vm775, 1, 0
      %v840 = vsel %vm776, 1, 0
      %v841 = vsel %vm777, 1, 0
      %v842 = vsel %vm778, 1, 0
      %v843 = vsel %vm779, 1, 0
      %v844 = vsel %vm780, 1, 0
      %v845 = vsel %vm781, 1, 0
      %v846 = vsel %vm782, 1, 0
      %v847 = vsel %vm783, 1, 0
      %v848 = vsel %vm784, 1, 0
      %v849 = vsel %vm785, 1, 0
      %v850 = vsel %vm786, 1, 0
      %v851 = vsel %vm787, 1, 0
      %v852 = vsel %vm788, 1, 0
      %v853 = vsel %vm789, 1, 0
      %v854 = vsel %vm790, 1, 0
      %v855 = vsel %vm791, 1, 0
      %v856 = vsel %vm792, 1, 0
      %v857 = vsel %vm793, 1, 0
      %v858 = vsel %vm794, 1, 0
      %v859 = vsel %vm795, 1, 0
      %v860 = vsel %vm796, 1, 0
      %v861 = vsel %vm797, 1, 0
      %v862 = vsel %vm798, 1, 0
      %v863 = vsel %vm799, 1, 0
      %v864 = vsel %vm800, 1, 0
      %v865 = vsel %vm801, 1, 0
      %v866 = vsel %vm802, 1, 0
      %v867 = vsel %vm803, 1, 0
      %v868 = vsel %vm804, 1, 0
      %v869 = vsel %vm805, 1, 0
      %v870 = vsel %vm806, 1, 0
      %v871 = vsel %vm807, 1, 0
      %v872 = vsel %vm808, 1, 0
      %v873 = vsel %vm809, 1, 0
      %v874 = vsel %vm810, 1, 0
      %v875 = vsel %vm811, 1, 0
      %v876 = vsel %vm812, 1, 0
      %v877 = vsel %vm813, 1, 0
      %v878 = vsel %vm814, 1, 0
      %v879 = vsel %vm815, 1, 0
      %v880 = vsel %vm816, 1, 0
      %v881 = vsel %vm817, 1, 0
      %v882 = vsel %vm818, 1, 0
      %v883 = vsel %vm819, 1, 0
      %v884 = vsel %vm820, 1, 0
      %v885 = vsel %vm821, 1, 0
      %v886 = vsel %vm822, 1, 0
      %v887 = vsel %vm823, 1, 0
      %v888 = vsel %vm824, 1, 0
      %v889 = vsel %vm825, 1, 0
      %v890 = vsel %vm826, 1, 0
      %v891 = vsel %vm827, 1, 0
      %v892 = vsel %vm828, 1, 0
      %v893 = vsel %vm829, 1, 0
      %v894 = vsel %vm830, 1, 0
      %v895 = vsel %vm831, 1, 0
      %v896 = vsel %vm832, 1, 0
      %v897 = vsel %vm833, 1, 0
      %v898 = vsel %vm834, 1, 0
      %v899 = vsel %vm835, 1, 0
      %v900 = vsel %vm836, 1, 0
      %v901 = vsel %vm837, 1, 0
      %v902 = vcvt.s32.f32 %v838
      %v903 = vcvt.s32.f32 %v839
      %v904 = vcvt.s32.f32 %v840
      %v905 = vcvt.s32.f32 %v841
      %v906 = vcvt.s32.f32 %v842
      %v907 = vcvt.s32.f32 %v843
      %v908 = vcvt.s32.f32 %v844
      %v909 = vcvt.s32.f32 %v845
      %v910 = vcvt.s32.f32 %v846
      %v911 = vcvt.s32.f32 %v847
      %v912 = vcvt.s32.f32 %v848
      %v913 = vcvt.s32.f32 %v849
      %v914 = vcvt.s32.f32 %v850
      %v915 = vcvt.s32.f32 %v851
      %v916 = vcvt.s32.f32 %v852
      %v917 = vcvt.s32.f32 %v853
      %v918 = vcvt.s32.f32 %v854
      %v919 = vcvt.s32.f32 %v855
      %v920 = vcvt.s32.f32 %v856
      %v921 = vcvt.s32.f32 %v857
      %v922 = vcvt.s32.f32 %v858
      %v923 = vcvt.s32.f32 %v859
      %v924 = vcvt.s32.f32 %v860
      %v925 = vcvt.s32.f32 %v861
      %v926 = vcvt.s32.f32 %v862
      %v927 = vcvt.s32.f32 %v863
      %v928 = vcvt.s32.f32 %v864
      %v929 = vcvt.s32.f32 %v865
      %v930 = vcvt.s32.f32 %v866
      %v931 = vcvt.s32.f32 %v867
      %v932 = vcvt.s32.f32 %v868
      %v933 = vcvt.s32.f32 %v869
      %v934 = vcvt.s32.f32 %v870
      %v935 = vcvt.s32.f32 %v871
      %v936 = vcvt.s32.f32 %v872
      %v937 = vcvt.s32.f32 %v873
      %v938 = vcvt.s32.f32 %v874
      %v939 = vcvt.s32.f32 %v875
      %v940 = vcvt.s32.f32 %v876
      %v941 = vcvt.s32.f32 %v877
      %v942 = vcvt.s32.f32 %v878
      %v943 = vcvt.s32.f32 %v879
      %v944 = vcvt.s32.f32 %v880
      %v945 = vcvt.s32.f32 %v881
      %v946 = vcvt.s32.f32 %v882
      %v947 = vcvt.s32.f32 %v883
      %v948 = vcvt.s32.f32 %v884
      %v949 = vcvt.s32.f32 %v885
      %v950 = vcvt.s32.f32 %v886
      %v951 = vcvt.s32.f32 %v887
      %v952 = vcvt.s32.f32 %v888
      %v953 = vcvt.s32.f32 %v889
      %v954 = vcvt.s32.f32 %v890
      %v955 = vcvt.s32.f32 %v891
      %v956 = vcvt.s32.f32 %v892
      %v957 = vcvt.s32.f32 %v893
      %v958 = vcvt.s32.f32 %v894
      %v959 = vcvt.s32.f32 %v895
      %v960 = vcvt.s32.f32 %v896
      %v961 = vcvt.s32.f32 %v897
      %v962 = vcvt.s32.f32 %v898
      %v963 = vcvt.s32.f32 %v899
      %v964 = vcvt.s32.f32 %v900
      %v965 = vcvt.s32.f32 %v901
      %v966 = vpack.c.bf16 %v902, %v902
      %v967 = vpack.c.bf16 %v903, %v903
      %v968 = vpack.c.bf16 %v904, %v904
      %v969 = vpack.c.bf16 %v905, %v905
      %v970 = vpack.c.bf16 %v906, %v906
      %v971 = vpack.c.bf16 %v907, %v907
      %v972 = vpack.c.bf16 %v908, %v908
      %v973 = vpack.c.bf16 %v909, %v909
      %v974 = vpack.c.bf16 %v910, %v910
      %v975 = vpack.c.bf16 %v911, %v911
      %v976 = vpack.c.bf16 %v912, %v912
      %v977 = vpack.c.bf16 %v913, %v913
      %v978 = vpack.c.bf16 %v914, %v914
      %v979 = vpack.c.bf16 %v915, %v915
      %v980 = vpack.c.bf16 %v916, %v916
      %v981 = vpack.c.bf16 %v917, %v917
      %v982 = vpack.c.bf16 %v918, %v918
      %v983 = vpack.c.bf16 %v919, %v919
      %v984 = vpack.c.bf16 %v920, %v920
      %v985 = vpack.c.bf16 %v921, %v921
      %v986 = vpack.c.bf16 %v922, %v922
      %v987 = vpack.c.bf16 %v923, %v923
      %v988 = vpack.c.bf16 %v924, %v924
      %v989 = vpack.c.bf16 %v925, %v925
      %v990 = vpack.c.bf16 %v926, %v926
      %v991 = vpack.c.bf16 %v927, %v927
      %v992 = vpack.c.bf16 %v928, %v928
      %v993 = vpack.c.bf16 %v929, %v929
      %v994 = vpack.c.bf16 %v930, %v930
      %v995 = vpack.c.bf16 %v931, %v931
      %v996 = vpack.c.bf16 %v932, %v932
      %v997 = vpack.c.bf16 %v933, %v933
      %v998 = vpack.c.bf16 %v934, %v934
      %v999 = vpack.c.bf16 %v935, %v935
      %v1000 = vpack.c.bf16 %v936, %v936
      %v1001 = vpack.c.bf16 %v937, %v937
      %v1002 = vpack.c.bf16 %v938, %v938
      %v1003 = vpack.c.bf16 %v939, %v939
      %v1004 = vpack.c.bf16 %v940, %v940
      %v1005 = vpack.c.bf16 %v941, %v941
      %v1006 = vpack.c.bf16 %v942, %v942
      %v1007 = vpack.c.bf16 %v943, %v943
      %v1008 = vpack.c.bf16 %v944, %v944
      %v1009 = vpack.c.bf16 %v945, %v945
      %v1010 = vpack.c.bf16 %v946, %v946
      %v1011 = vpack.c.bf16 %v947, %v947
      %v1012 = vpack.c.bf16 %v948, %v948
      %v1013 = vpack.c.bf16 %v949, %v949
      %v1014 = vpack.c.bf16 %v950, %v950
      %v1015 = vpack.c.bf16 %v951, %v951
      %v1016 = vpack.c.bf16 %v952, %v952
      %v1017 = vpack.c.bf16 %v953, %v953
      %v1018 = vpack.c.bf16 %v954, %v954
      %v1019 = vpack.c.bf16 %v955, %v955
      %v1020 = vpack.c.bf16 %v956, %v956
      %v1021 = vpack.c.bf16 %v957, %v957
      %v1022 = vpack.c.bf16 %v958, %v958
      %v1023 = vpack.c.bf16 %v959, %v959
      %v1024 = vpack.c.bf16 %v960, %v960
      %v1025 = vpack.c.bf16 %v961, %v961
      %v1026 = vpack.c.bf16 %v962, %v962
      %v1027 = vpack.c.bf16 %v963, %v963
      %v1028 = vpack.c.bf16 %v964, %v964
      %v1029 = vpack.c.bf16 %v965, %v965
      %v1094 = vunpack.c.l.b16 %v966
      %v1095 = vunpack.c.l.b16 %v967
      %v1096 = vunpack.c.l.b16 %v968
      %v1097 = vunpack.c.l.b16 %v969
      %v1098 = vunpack.c.l.b16 %v970
      %v1099 = vunpack.c.l.b16 %v971
      %v1100 = vunpack.c.l.b16 %v972
      %v1101 = vunpack.c.l.b16 %v973
      %v1102 = vunpack.c.l.b16 %v974
      %v1103 = vunpack.c.l.b16 %v975
      %v1104 = vunpack.c.l.b16 %v976
      %v1105 = vunpack.c.l.b16 %v977
      %v1106 = vunpack.c.l.b16 %v978
      %v1107 = vunpack.c.l.b16 %v979
      %v1108 = vunpack.c.l.b16 %v980
      %v1109 = vunpack.c.l.b16 %v981
      %v1110 = vunpack.c.l.b16 %v982
      %v1111 = vunpack.c.l.b16 %v983
      %v1112 = vunpack.c.l.b16 %v984
      %v1113 = vunpack.c.l.b16 %v985
      %v1114 = vunpack.c.l.b16 %v986
      %v1115 = vunpack.c.l.b16 %v987
      %v1116 = vunpack.c.l.b16 %v988
      %v1117 = vunpack.c.l.b16 %v989
      %v1118 = vunpack.c.l.b16 %v990
      %v1119 = vunpack.c.l.b16 %v991
      %v1120 = vunpack.c.l.b16 %v992
      %v1121 = vunpack.c.l.b16 %v993
      %v1122 = vunpack.c.l.b16 %v994
      %v1123 = vunpack.c.l.b16 %v995
      %v1124 = vunpack.c.l.b16 %v996
      %v1125 = vunpack.c.l.b16 %v997
      %v1126 = vunpack.c.l.b16 %v998
      %v1127 = vunpack.c.l.b16 %v999
      %v1128 = vunpack.c.l.b16 %v1000
      %v1129 = vunpack.c.l.b16 %v1001
      %v1130 = vunpack.c.l.b16 %v1002
      %v1131 = vunpack.c.l.b16 %v1003
      %v1132 = vunpack.c.l.b16 %v1004
      %v1133 = vunpack.c.l.b16 %v1005
      %v1134 = vunpack.c.l.b16 %v1006
      %v1135 = vunpack.c.l.b16 %v1007
      %v1136 = vunpack.c.l.b16 %v1008
      %v1137 = vunpack.c.l.b16 %v1009
      %v1138 = vunpack.c.l.b16 %v1010
      %v1139 = vunpack.c.l.b16 %v1011
      %v1140 = vunpack.c.l.b16 %v1012
      %v1141 = vunpack.c.l.b16 %v1013
      %v1142 = vunpack.c.l.b16 %v1014
      %v1143 = vunpack.c.l.b16 %v1015
      %v1144 = vunpack.c.l.b16 %v1016
      %v1145 = vunpack.c.l.b16 %v1017
      %v1146 = vunpack.c.l.b16 %v1018
      %v1147 = vunpack.c.l.b16 %v1019
      %v1148 = vunpack.c.l.b16 %v1020
      %v1149 = vunpack.c.l.b16 %v1021
      %v1150 = vunpack.c.l.b16 %v1022
      %v1151 = vunpack.c.l.b16 %v1023
      %v1152 = vunpack.c.l.b16 %v1024
      %v1153 = vunpack.c.l.b16 %v1025
      %v1154 = vunpack.c.l.b16 %v1026
      %v1155 = vunpack.c.l.b16 %v1027
      %v1156 = vunpack.c.l.b16 %v1028
      %v1157 = vunpack.c.l.b16 %v1029
      %v1158 = vpack.c.b16 %v1095, %v1094
      %v1159 = vpack.c.b16 %v1097, %v1096
      %v1160 = vpack.c.b16 %v1099, %v1098
      %v1161 = vpack.c.b16 %v1101, %v1100
      %v1162 = vpack.c.b16 %v1103, %v1102
      %v1163 = vpack.c.b16 %v1105, %v1104
      %v1164 = vpack.c.b16 %v1107, %v1106
      %v1165 = vpack.c.b16 %v1109, %v1108
      %v1166 = vpack.c.b16 %v1111, %v1110
      %v1167 = vpack.c.b16 %v1113, %v1112
      %v1168 = vpack.c.b16 %v1115, %v1114
      %v1169 = vpack.c.b16 %v1117, %v1116
      %v1170 = vpack.c.b16 %v1119, %v1118
      %v1171 = vpack.c.b16 %v1121, %v1120
      %v1172 = vpack.c.b16 %v1123, %v1122
      %v1173 = vpack.c.b16 %v1125, %v1124
      %v1174 = vpack.c.b16 %v1127, %v1126
      %v1175 = vpack.c.b16 %v1129, %v1128
      %v1176 = vpack.c.b16 %v1131, %v1130
      %v1177 = vpack.c.b16 %v1133, %v1132
      %v1178 = vpack.c.b16 %v1135, %v1134
      %v1179 = vpack.c.b16 %v1137, %v1136
      %v1180 = vpack.c.b16 %v1139, %v1138
      %v1181 = vpack.c.b16 %v1141, %v1140
      %v1182 = vpack.c.b16 %v1143, %v1142
      %v1183 = vpack.c.b16 %v1145, %v1144
      %v1184 = vpack.c.b16 %v1147, %v1146
      %v1185 = vpack.c.b16 %v1149, %v1148
      %v1186 = vpack.c.b16 %v1151, %v1150
      %v1187 = vpack.c.b16 %v1153, %v1152
      %v1188 = vpack.c.b16 %v1155, %v1154
      %v1189 = vpack.c.b16 %v1157, %v1156
      %v1238 = vunpack.c.l.b16 %v239
      %v1239 = vunpack.c.l.b16 %v240
      %v1240 = vunpack.c.l.b16 %v241
      %v1241 = vunpack.c.l.b16 %v242
      %v1242 = vunpack.c.l.b16 %v243
      %v1243 = vunpack.c.l.b16 %v244
      %v1244 = vunpack.c.l.b16 %v245
      %v1245 = vunpack.c.l.b16 %v246
      %v1246 = vunpack.c.l.b16 %v247
      %v1247 = vunpack.c.l.b16 %v248
      %v1248 = vunpack.c.l.b16 %v249
      %v1249 = vunpack.c.l.b16 %v250
      %v1250 = vunpack.c.l.b16 %v251
      %v1251 = vunpack.c.l.b16 %v252
      %v1252 = vunpack.c.l.b16 %v253
      %v1253 = vunpack.c.l.b16 %v254
      %v1254 = vpack.c.b16 %v1239, %v1238
      %v1255 = vpack.c.b16 %v1241, %v1240
      %v1256 = vpack.c.b16 %v1243, %v1242
      %v1257 = vpack.c.b16 %v1245, %v1244
      %v1258 = vpack.c.b16 %v1247, %v1246
      %v1259 = vpack.c.b16 %v1249, %v1248
      %v1260 = vpack.c.b16 %v1251, %v1250
      %v1261 = vpack.c.b16 %v1253, %v1252
      %1270 = vmatpush.bf16.msra.mxu0 %v1261
      %1271 = vmatpush.bf16.msra.mxu0 %v1260
      %1272 = vmatpush.bf16.msra.mxu0 %v1259
      %1273 = vmatpush.bf16.msra.mxu0 %v1258
      %1274 = vmatpush.bf16.msra.mxu0 %v1257
      %1275 = vmatpush.bf16.msra.mxu0 %v1256
      %1276 = vmatpush.bf16.msra.mxu0 %v1255
      %1277 = vmatpush.bf16.msra.mxu0 %v1254
      %1278 = vmatmul.bf16.gmra.mxu0 %v1158
      %v1279 = vpop.f32.mrf.mxu0
      %v1280 = vadd.f32 0.0, %v1279
      %v1281 = vpop.f32.mrf.mxu0
      %v1282 = vadd.f32 0.0, %v1281
      %1283 = vmatmul.bf16.gmra.mxu0 %v1159
      %v1284 = vpop.f32.mrf.mxu0
      %v1285 = vadd.f32 0.0, %v1284
      %v1286 = vpop.f32.mrf.mxu0
      %v1287 = vadd.f32 0.0, %v1286
      %1288 = vmatmul.bf16.gmra.mxu0 %v1160
      %v1289 = vpop.f32.mrf.mxu0
      %v1290 = vadd.f32 0.0, %v1289
      %v1291 = vpop.f32.mrf.mxu0
      %v1292 = vadd.f32 0.0, %v1291
      %1293 = vmatmul.bf16.gmra.mxu0 %v1161
      %v1294 = vpop.f32.mrf.mxu0
      %v1295 = vadd.f32 0.0, %v1294
      %v1296 = vpop.f32.mrf.mxu0
      %v1297 = vadd.f32 0.0, %v1296
      %1298 = vmatmul.bf16.gmra.mxu0 %v1162
      %v1299 = vpop.f32.mrf.mxu0
      %v1300 = vadd.f32 0.0, %v1299
      %v1301 = vpop.f32.mrf.mxu0
      %v1302 = vadd.f32 0.0, %v1301
      %1303 = vmatmul.bf16.gmra.mxu0 %v1163
      %v1304 = vpop.f32.mrf.mxu0
      %v1305 = vadd.f32 0.0, %v1304
      %v1306 = vpop.f32.mrf.mxu0
      %v1307 = vadd.f32 0.0, %v1306
      %1308 = vmatmul.bf16.gmra.mxu0 %v1164
      %v1309 = vpop.f32.mrf.mxu0
      %v1310 = vadd.f32 0.0, %v1309
      %v1311 = vpop.f32.mrf.mxu0
      %v1312 = vadd.f32 0.0, %v1311
      %1313 = vmatmul.bf16.gmra.mxu0 %v1165
      %v1314 = vpop.f32.mrf.mxu0
      %v1315 = vadd.f32 0.0, %v1314
      %v1316 = vpop.f32.mrf.mxu0
      %v1317 = vadd.f32 0.0, %v1316
      %1318 = vmatmul.bf16.gmra.mxu0 %v1166
      %v1319 = vpop.f32.mrf.mxu0
      %v1320 = vadd.f32 0.0, %v1319
      %v1321 = vpop.f32.mrf.mxu0
      %v1322 = vadd.f32 0.0, %v1321
      %1323 = vmatmul.bf16.gmra.mxu0 %v1167
      %v1324 = vpop.f32.mrf.mxu0
      %v1325 = vadd.f32 0.0, %v1324
      %v1326 = vpop.f32.mrf.mxu0
      %v1327 = vadd.f32 0.0, %v1326
      %1328 = vmatmul.bf16.gmra.mxu0 %v1168
      %v1329 = vpop.f32.mrf.mxu0
      %v1330 = vadd.f32 0.0, %v1329
      %v1331 = vpop.f32.mrf.mxu0
      %v1332 = vadd.f32 0.0, %v1331
      %1333 = vmatmul.bf16.gmra.mxu0 %v1169
      %v1334 = vpop.f32.mrf.mxu0
      %v1335 = vadd.f32 0.0, %v1334
      %v1336 = vpop.f32.mrf.mxu0
      %v1337 = vadd.f32 0.0, %v1336
      %1338 = vmatmul.bf16.gmra.mxu0 %v1170
      %v1339 = vpop.f32.mrf.mxu0
      %v1340 = vadd.f32 0.0, %v1339
      %v1341 = vpop.f32.mrf.mxu0
      %v1342 = vadd.f32 0.0, %v1341
      %1343 = vmatmul.bf16.gmra.mxu0 %v1171
      %v1344 = vpop.f32.mrf.mxu0
      %v1345 = vadd.f32 0.0, %v1344
      %v1346 = vpop.f32.mrf.mxu0
      %v1347 = vadd.f32 0.0, %v1346
      %1348 = vmatmul.bf16.gmra.mxu0 %v1172
      %v1349 = vpop.f32.mrf.mxu0
      %v1350 = vadd.f32 0.0, %v1349
      %v1351 = vpop.f32.mrf.mxu0
      %v1352 = vadd.f32 0.0, %v1351
      %1353 = vmatmul.bf16.gmra.mxu0 %v1173
      %v1354 = vpop.f32.mrf.mxu0
      %v1355 = vadd.f32 0.0, %v1354
      %v1356 = vpop.f32.mrf.mxu0
      %v1357 = vadd.f32 0.0, %v1356
      %1358 = vmatmul.bf16.gmra.mxu0 %v1174
      %v1359 = vpop.f32.mrf.mxu0
      %v1360 = vadd.f32 0.0, %v1359
      %v1361 = vpop.f32.mrf.mxu0
      %v1362 = vadd.f32 0.0, %v1361
      %1363 = vmatmul.bf16.gmra.mxu0 %v1175
      %v1364 = vpop.f32.mrf.mxu0
      %v1365 = vadd.f32 0.0, %v1364
      %v1366 = vpop.f32.mrf.mxu0
      %v1367 = vadd.f32 0.0, %v1366
      %1368 = vmatmul.bf16.gmra.mxu0 %v1176
      %v1369 = vpop.f32.mrf.mxu0
      %v1370 = vadd.f32 0.0, %v1369
      %v1371 = vpop.f32.mrf.mxu0
      %v1372 = vadd.f32 0.0, %v1371
      %1373 = vmatmul.bf16.gmra.mxu0 %v1177
      %v1374 = vpop.f32.mrf.mxu0
      %v1375 = vadd.f32 0.0, %v1374
      %v1376 = vpop.f32.mrf.mxu0
      %v1377 = vadd.f32 0.0, %v1376
      %1378 = vmatmul.bf16.gmra.mxu0 %v1178
      %v1379 = vpop.f32.mrf.mxu0
      %v1380 = vadd.f32 0.0, %v1379
      %v1381 = vpop.f32.mrf.mxu0
      %v1382 = vadd.f32 0.0, %v1381
      %1383 = vmatmul.bf16.gmra.mxu0 %v1179
      %v1384 = vpop.f32.mrf.mxu0
      %v1385 = vadd.f32 0.0, %v1384
      %v1386 = vpop.f32.mrf.mxu0
      %v1387 = vadd.f32 0.0, %v1386
      %1388 = vmatmul.bf16.gmra.mxu0 %v1180
      %v1389 = vpop.f32.mrf.mxu0
      %v1390 = vadd.f32 0.0, %v1389
      %v1391 = vpop.f32.mrf.mxu0
      %v1392 = vadd.f32 0.0, %v1391
      %1393 = vmatmul.bf16.gmra.mxu0 %v1181
      %v1394 = vpop.f32.mrf.mxu0
      %v1395 = vadd.f32 0.0, %v1394
      %v1396 = vpop.f32.mrf.mxu0
      %v1397 = vadd.f32 0.0, %v1396
      %1398 = vmatmul.bf16.gmra.mxu0 %v1182
      %v1399 = vpop.f32.mrf.mxu0
      %v1400 = vadd.f32 0.0, %v1399
      %v1401 = vpop.f32.mrf.mxu0
      %v1402 = vadd.f32 0.0, %v1401
      %1403 = vmatmul.bf16.gmra.mxu0 %v1183
      %v1404 = vpop.f32.mrf.mxu0
      %v1405 = vadd.f32 0.0, %v1404
      %v1406 = vpop.f32.mrf.mxu0
      %v1407 = vadd.f32 0.0, %v1406
      %1408 = vmatmul.bf16.gmra.mxu0 %v1184
      %v1409 = vpop.f32.mrf.mxu0
      %v1410 = vadd.f32 0.0, %v1409
      %v1411 = vpop.f32.mrf.mxu0
      %v1412 = vadd.f32 0.0, %v1411
      %1413 = vmatmul.bf16.gmra.mxu0 %v1185
      %v1414 = vpop.f32.mrf.mxu0
      %v1415 = vadd.f32 0.0, %v1414
      %v1416 = vpop.f32.mrf.mxu0
      %v1417 = vadd.f32 0.0, %v1416
      %1418 = vmatmul.bf16.gmra.mxu0 %v1186
      %v1419 = vpop.f32.mrf.mxu0
      %v1420 = vadd.f32 0.0, %v1419
      %v1421 = vpop.f32.mrf.mxu0
      %v1422 = vadd.f32 0.0, %v1421
      %1423 = vmatmul.bf16.gmra.mxu0 %v1187
      %v1424 = vpop.f32.mrf.mxu0
      %v1425 = vadd.f32 0.0, %v1424
      %v1426 = vpop.f32.mrf.mxu0
      %v1427 = vadd.f32 0.0, %v1426
      %1428 = vmatmul.bf16.gmra.mxu0 %v1188
      %v1429 = vpop.f32.mrf.mxu0
      %v1430 = vadd.f32 0.0, %v1429
      %v1431 = vpop.f32.mrf.mxu0
      %v1432 = vadd.f32 0.0, %v1431
      %1433 = vmatmul.bf16.gmra.mxu0 %v1189
      %v1434 = vpop.f32.mrf.mxu0
      %v1435 = vadd.f32 0.0, %v1434
      %v1436 = vpop.f32.mrf.mxu0
      %v1437 = vadd.f32 0.0, %v1436
      %1438 = vdwg.mxu0
      %v1443 = vrot.slane %v345, 1
      %v1444 = vrot.slane %v345, 2
      %v1445 = vrot.slane %v345, 3
      %v1446 = vrot.slane %v345, 4
      %v1447 = vrot.slane %v345, 5
      %v1448 = vrot.slane %v345, 6
      %v1449 = vrot.slane %v345, 7
      %v1450 = vrot.slane %v347, 1
      %v1451 = vrot.slane %v347, 2
      %v1452 = vrot.slane %v347, 3
      %v1453 = vrot.slane %v347, 4
      %v1454 = vrot.slane %v347, 5
      %v1455 = vrot.slane %v347, 6
      %v1456 = vrot.slane %v347, 7
      %v1457 = vrot.slane %v350, 1
      %v1458 = vrot.slane %v350, 2
      %v1459 = vrot.slane %v350, 3
      %v1460 = vrot.slane %v350, 4
      %v1461 = vrot.slane %v350, 5
      %v1462 = vrot.slane %v350, 6
      %v1463 = vrot.slane %v350, 7
      %v1464 = vrot.slane %v352, 1
      %v1465 = vrot.slane %v352, 2
      %v1466 = vrot.slane %v352, 3
      %v1467 = vrot.slane %v352, 4
      %v1468 = vrot.slane %v352, 5
      %v1469 = vrot.slane %v352, 6
      %v1470 = vrot.slane %v352, 7
      %v1471 = vperm.slane %v345, 0
      %v1472 = vperm.slane %v1443, 0
      %v1473 = vperm.slane %v1444, 0
      %v1474 = vperm.slane %v1445, 0
      %v1475 = vperm.slane %v1446, 0
      %v1476 = vperm.slane %v1447, 0
      %v1477 = vperm.slane %v1448, 0
      %v1478 = vperm.slane %v1449, 0
      %v1479 = vperm.slane %v347, 0
      %v1480 = vperm.slane %v1450, 0
      %v1481 = vperm.slane %v1451, 0
      %v1482 = vperm.slane %v1452, 0
      %v1483 = vperm.slane %v1453, 0
      %v1484 = vperm.slane %v1454, 0
      %v1485 = vperm.slane %v1455, 0
      %v1486 = vperm.slane %v1456, 0
      %v1487 = vperm.slane %v350, 0
      %v1488 = vperm.slane %v1457, 0
      %v1489 = vperm.slane %v1458, 0
      %v1490 = vperm.slane %v1459, 0
      %v1491 = vperm.slane %v1460, 0
      %v1492 = vperm.slane %v1461, 0
      %v1493 = vperm.slane %v1462, 0
      %v1494 = vperm.slane %v1463, 0
      %v1495 = vperm.slane %v352, 0
      %v1496 = vperm.slane %v1464, 0
      %v1497 = vperm.slane %v1465, 0
      %v1498 = vperm.slane %v1466, 0
      %v1499 = vperm.slane %v1467, 0
      %v1500 = vperm.slane %v1468, 0
      %v1501 = vperm.slane %v1469, 0
      %v1502 = vperm.slane %v1470, 0
      %v1535 = vmul.f32 %v1280, %v1471
      %v1536 = vmul.f32 %v1282, %v1471
      %v1537 = vmul.f32 %v1285, %v1472
      %v1538 = vmul.f32 %v1287, %v1472
      %v1539 = vmul.f32 %v1290, %v1473
      %v1540 = vmul.f32 %v1292, %v1473
      %v1541 = vmul.f32 %v1295, %v1474
      %v1542 = vmul.f32 %v1297, %v1474
      %v1543 = vmul.f32 %v1300, %v1475
      %v1544 = vmul.f32 %v1302, %v1475
      %v1545 = vmul.f32 %v1305, %v1476
      %v1546 = vmul.f32 %v1307, %v1476
      %v1547 = vmul.f32 %v1310, %v1477
      %v1548 = vmul.f32 %v1312, %v1477
      %v1549 = vmul.f32 %v1315, %v1478
      %v1550 = vmul.f32 %v1317, %v1478
      %v1551 = vmul.f32 %v1320, %v1479
      %v1552 = vmul.f32 %v1322, %v1479
      %v1553 = vmul.f32 %v1325, %v1480
      %v1554 = vmul.f32 %v1327, %v1480
      %v1555 = vmul.f32 %v1330, %v1481
      %v1556 = vmul.f32 %v1332, %v1481
      %v1557 = vmul.f32 %v1335, %v1482
      %v1558 = vmul.f32 %v1337, %v1482
      %v1559 = vmul.f32 %v1340, %v1483
      %v1560 = vmul.f32 %v1342, %v1483
      %v1561 = vmul.f32 %v1345, %v1484
      %v1562 = vmul.f32 %v1347, %v1484
      %v1563 = vmul.f32 %v1350, %v1485
      %v1564 = vmul.f32 %v1352, %v1485
      %v1565 = vmul.f32 %v1355, %v1486
      %v1566 = vmul.f32 %v1357, %v1486
      %v1567 = vmul.f32 %v1360, %v1487
      %v1568 = vmul.f32 %v1362, %v1487
      %v1569 = vmul.f32 %v1365, %v1488
      %v1570 = vmul.f32 %v1367, %v1488
      %v1571 = vmul.f32 %v1370, %v1489
      %v1572 = vmul.f32 %v1372, %v1489
      %v1573 = vmul.f32 %v1375, %v1490
      %v1574 = vmul.f32 %v1377, %v1490
      %v1575 = vmul.f32 %v1380, %v1491
      %v1576 = vmul.f32 %v1382, %v1491
      %v1577 = vmul.f32 %v1385, %v1492
      %v1578 = vmul.f32 %v1387, %v1492
      %v1579 = vmul.f32 %v1390, %v1493
      %v1580 = vmul.f32 %v1392, %v1493
      %v1581 = vmul.f32 %v1395, %v1494
      %v1582 = vmul.f32 %v1397, %v1494
      %v1583 = vmul.f32 %v1400, %v1495
      %v1584 = vmul.f32 %v1402, %v1495
      %v1585 = vmul.f32 %v1405, %v1496
      %v1586 = vmul.f32 %v1407, %v1496
      %v1587 = vmul.f32 %v1410, %v1497
      %v1588 = vmul.f32 %v1412, %v1497
      %v1589 = vmul.f32 %v1415, %v1498
      %v1590 = vmul.f32 %v1417, %v1498
      %v1591 = vmul.f32 %v1420, %v1499
      %v1592 = vmul.f32 %v1422, %v1499
      %v1593 = vmul.f32 %v1425, %v1500
      %v1594 = vmul.f32 %v1427, %v1500
      %v1595 = vmul.f32 %v1430, %v1501
      %v1596 = vmul.f32 %v1432, %v1501
      %v1597 = vmul.f32 %v1435, %v1502
      %v1598 = vmul.f32 %v1437, %v1502
      %1599 = vadd.xlane.f32.xlu0 %v1535
      %v1600 = vpop.xlane.xlu0 %1599
      %1601 = vadd.xlane.f32.xlu0 %v1536
      %v1602 = vpop.xlane.xlu0 %1601
      %1603 = vadd.xlane.f32.xlu0 %v1537
      %v1604 = vpop.xlane.xlu0 %1603
      %1605 = vadd.xlane.f32.xlu0 %v1538
      %v1606 = vpop.xlane.xlu0 %1605
      %1607 = vadd.xlane.f32.xlu0 %v1539
      %v1608 = vpop.xlane.xlu0 %1607
      %1609 = vadd.xlane.f32.xlu0 %v1540
      %v1610 = vpop.xlane.xlu0 %1609
      %1611 = vadd.xlane.f32.xlu0 %v1541
      %v1612 = vpop.xlane.xlu0 %1611
      %1613 = vadd.xlane.f32.xlu0 %v1542
      %v1614 = vpop.xlane.xlu0 %1613
      %1615 = vadd.xlane.f32.xlu0 %v1543
      %v1616 = vpop.xlane.xlu0 %1615
      %1617 = vadd.xlane.f32.xlu0 %v1544
      %v1618 = vpop.xlane.xlu0 %1617
      %1619 = vadd.xlane.f32.xlu0 %v1545
      %v1620 = vpop.xlane.xlu0 %1619
      %1621 = vadd.xlane.f32.xlu0 %v1546
      %v1622 = vpop.xlane.xlu0 %1621
      %1623 = vadd.xlane.f32.xlu0 %v1547
      %v1624 = vpop.xlane.xlu0 %1623
      %1625 = vadd.xlane.f32.xlu0 %v1548
      %v1626 = vpop.xlane.xlu0 %1625
      %1627 = vadd.xlane.f32.xlu0 %v1549
      %v1628 = vpop.xlane.xlu0 %1627
      %1629 = vadd.xlane.f32.xlu0 %v1550
      %v1630 = vpop.xlane.xlu0 %1629
      %1631 = vadd.xlane.f32.xlu0 %v1551
      %v1632 = vpop.xlane.xlu0 %1631
      %1633 = vadd.xlane.f32.xlu0 %v1552
      %v1634 = vpop.xlane.xlu0 %1633
      %1635 = vadd.xlane.f32.xlu0 %v1553
      %v1636 = vpop.xlane.xlu0 %1635
      %1637 = vadd.xlane.f32.xlu0 %v1554
      %v1638 = vpop.xlane.xlu0 %1637
      %1639 = vadd.xlane.f32.xlu0 %v1555
      %v1640 = vpop.xlane.xlu0 %1639
      %1641 = vadd.xlane.f32.xlu0 %v1556
      %v1642 = vpop.xlane.xlu0 %1641
      %1643 = vadd.xlane.f32.xlu0 %v1557
      %v1644 = vpop.xlane.xlu0 %1643
      %1645 = vadd.xlane.f32.xlu0 %v1558
      %v1646 = vpop.xlane.xlu0 %1645
      %1647 = vadd.xlane.f32.xlu0 %v1559
      %v1648 = vpop.xlane.xlu0 %1647
      %1649 = vadd.xlane.f32.xlu0 %v1560
      %v1650 = vpop.xlane.xlu0 %1649
      %1651 = vadd.xlane.f32.xlu0 %v1561
      %v1652 = vpop.xlane.xlu0 %1651
      %1653 = vadd.xlane.f32.xlu0 %v1562
      %v1654 = vpop.xlane.xlu0 %1653
      %1655 = vadd.xlane.f32.xlu0 %v1563
      %v1656 = vpop.xlane.xlu0 %1655
      %1657 = vadd.xlane.f32.xlu0 %v1564
      %v1658 = vpop.xlane.xlu0 %1657
      %1659 = vadd.xlane.f32.xlu0 %v1565
      %v1660 = vpop.xlane.xlu0 %1659
      %1661 = vadd.xlane.f32.xlu0 %v1566
      %v1662 = vpop.xlane.xlu0 %1661
      %1663 = vadd.xlane.f32.xlu0 %v1567
      %v1664 = vpop.xlane.xlu0 %1663
      %1665 = vadd.xlane.f32.xlu0 %v1568
      %v1666 = vpop.xlane.xlu0 %1665
      %1667 = vadd.xlane.f32.xlu0 %v1569
      %v1668 = vpop.xlane.xlu0 %1667
      %1669 = vadd.xlane.f32.xlu0 %v1570
      %v1670 = vpop.xlane.xlu0 %1669
      %1671 = vadd.xlane.f32.xlu0 %v1571
      %v1672 = vpop.xlane.xlu0 %1671
      %1673 = vadd.xlane.f32.xlu0 %v1572
      %v1674 = vpop.xlane.xlu0 %1673
      %1675 = vadd.xlane.f32.xlu0 %v1573
      %v1676 = vpop.xlane.xlu0 %1675
      %1677 = vadd.xlane.f32.xlu0 %v1574
      %v1678 = vpop.xlane.xlu0 %1677
      %1679 = vadd.xlane.f32.xlu0 %v1575
      %v1680 = vpop.xlane.xlu0 %1679
      %1681 = vadd.xlane.f32.xlu0 %v1576
      %v1682 = vpop.xlane.xlu0 %1681
      %1683 = vadd.xlane.f32.xlu0 %v1577
      %v1684 = vpop.xlane.xlu0 %1683
      %1685 = vadd.xlane.f32.xlu0 %v1578
      %v1686 = vpop.xlane.xlu0 %1685
      %1687 = vadd.xlane.f32.xlu0 %v1579
      %v1688 = vpop.xlane.xlu0 %1687
      %1689 = vadd.xlane.f32.xlu0 %v1580
      %v1690 = vpop.xlane.xlu0 %1689
      %1691 = vadd.xlane.f32.xlu0 %v1581
      %v1692 = vpop.xlane.xlu0 %1691
      %1693 = vadd.xlane.f32.xlu0 %v1582
      %v1694 = vpop.xlane.xlu0 %1693
      %1695 = vadd.xlane.f32.xlu0 %v1583
      %v1696 = vpop.xlane.xlu0 %1695
      %1697 = vadd.xlane.f32.xlu0 %v1584
      %v1698 = vpop.xlane.xlu0 %1697
      %1699 = vadd.xlane.f32.xlu0 %v1585
      %v1700 = vpop.xlane.xlu0 %1699
      %1701 = vadd.xlane.f32.xlu0 %v1586
      %v1702 = vpop.xlane.xlu0 %1701
      %1703 = vadd.xlane.f32.xlu0 %v1587
      %v1704 = vpop.xlane.xlu0 %1703
      %1705 = vadd.xlane.f32.xlu0 %v1588
      %v1706 = vpop.xlane.xlu0 %1705
      %1707 = vadd.xlane.f32.xlu0 %v1589
      %v1708 = vpop.xlane.xlu0 %1707
      %1709 = vadd.xlane.f32.xlu0 %v1590
      %v1710 = vpop.xlane.xlu0 %1709
      %1711 = vadd.xlane.f32.xlu0 %v1591
      %v1712 = vpop.xlane.xlu0 %1711
      %1713 = vadd.xlane.f32.xlu0 %v1592
      %v1714 = vpop.xlane.xlu0 %1713
      %1715 = vadd.xlane.f32.xlu0 %v1593
      %v1716 = vpop.xlane.xlu0 %1715
      %1717 = vadd.xlane.f32.xlu0 %v1594
      %v1718 = vpop.xlane.xlu0 %1717
      %1719 = vadd.xlane.f32.xlu0 %v1595
      %v1720 = vpop.xlane.xlu0 %1719
      %1721 = vadd.xlane.f32.xlu0 %v1596
      %v1722 = vpop.xlane.xlu0 %1721
      %1723 = vadd.xlane.f32.xlu0 %v1597
      %v1724 = vpop.xlane.xlu0 %1723
      %1725 = vadd.xlane.f32.xlu0 %v1598
      %v1726 = vpop.xlane.xlu0 %1725
      %vm1727 = vcmp.le.s32.totalorder %v260, 8
      %v1792 = vperm.slane %v1600, %v260
      %v1793 = vadd.s32 %v260, 4294967288
      %v1794 = vperm.slane %v1602, %v1793
      %vm1795 = vcmask 130112
      %v1796 = vsel %vm1795, %v1794, %v1792
      %v1797 = vperm.slane %v1604, %v260
      %v1798 = vperm.slane %v1606, %v1793
      %v1799 = vsel %vm1795, %v1798, %v1797
      %v1800 = vperm.slane %v1608, %v260
      %v1801 = vperm.slane %v1610, %v1793
      %v1802 = vsel %vm1795, %v1801, %v1800
      %v1803 = vperm.slane %v1612, %v260
      %v1804 = vperm.slane %v1614, %v1793
      %v1805 = vsel %vm1795, %v1804, %v1803
      %v1806 = vperm.slane %v1616, %v260
      %v1807 = vperm.slane %v1618, %v1793
      %v1808 = vsel %vm1795, %v1807, %v1806
      %v1809 = vperm.slane %v1620, %v260
      %v1810 = vperm.slane %v1622, %v1793
      %v1811 = vsel %vm1795, %v1810, %v1809
      %v1812 = vperm.slane %v1624, %v260
      %v1813 = vperm.slane %v1626, %v1793
      %v1814 = vsel %vm1795, %v1813, %v1812
      %v1815 = vperm.slane %v1628, %v260
      %v1816 = vperm.slane %v1630, %v1793
      %v1817 = vsel %vm1795, %v1816, %v1815
      %v1818 = vperm.slane %v1632, %v260
      %v1819 = vperm.slane %v1634, %v1793
      %v1820 = vsel %vm1795, %v1819, %v1818
      %v1821 = vperm.slane %v1636, %v260
      %v1822 = vperm.slane %v1638, %v1793
      %v1823 = vsel %vm1795, %v1822, %v1821
      %v1824 = vperm.slane %v1640, %v260
      %v1825 = vperm.slane %v1642, %v1793
      %v1826 = vsel %vm1795, %v1825, %v1824
      %v1827 = vperm.slane %v1644, %v260
      %v1828 = vperm.slane %v1646, %v1793
      %v1829 = vsel %vm1795, %v1828, %v1827
      %v1830 = vperm.slane %v1648, %v260
      %v1831 = vperm.slane %v1650, %v1793
      %v1832 = vsel %vm1795, %v1831, %v1830
      %v1833 = vperm.slane %v1652, %v260
      %v1834 = vperm.slane %v1654, %v1793
      %v1835 = vsel %vm1795, %v1834, %v1833
      %v1836 = vperm.slane %v1656, %v260
      %v1837 = vperm.slane %v1658, %v1793
      %v1838 = vsel %vm1795, %v1837, %v1836
      %v1839 = vperm.slane %v1660, %v260
      %v1840 = vperm.slane %v1662, %v1793
      %v1841 = vsel %vm1795, %v1840, %v1839
      %v1842 = vperm.slane %v1664, %v260
      %v1843 = vperm.slane %v1666, %v1793
      %v1844 = vsel %vm1795, %v1843, %v1842
      %v1845 = vperm.slane %v1668, %v260
      %v1846 = vperm.slane %v1670, %v1793
      %v1847 = vsel %vm1795, %v1846, %v1845
      %v1848 = vperm.slane %v1672, %v260
      %v1849 = vperm.slane %v1674, %v1793
      %v1850 = vsel %vm1795, %v1849, %v1848
      %v1851 = vperm.slane %v1676, %v260
      %v1852 = vperm.slane %v1678, %v1793
      %v1853 = vsel %vm1795, %v1852, %v1851
      %v1854 = vperm.slane %v1680, %v260
      %v1855 = vperm.slane %v1682, %v1793
      %v1856 = vsel %vm1795, %v1855, %v1854
      %v1857 = vperm.slane %v1684, %v260
      %v1858 = vperm.slane %v1686, %v1793
      %v1859 = vsel %vm1795, %v1858, %v1857
      %v1860 = vperm.slane %v1688, %v260
      %v1861 = vperm.slane %v1690, %v1793
      %v1862 = vsel %vm1795, %v1861, %v1860
      %v1863 = vperm.slane %v1692, %v260
      %v1864 = vperm.slane %v1694, %v1793
      %v1865 = vsel %vm1795, %v1864, %v1863
      %v1866 = vperm.slane %v1696, %v260
      %v1867 = vperm.slane %v1698, %v1793
      %v1868 = vsel %vm1795, %v1867, %v1866
      %v1869 = vperm.slane %v1700, %v260
      %v1870 = vperm.slane %v1702, %v1793
      %v1871 = vsel %vm1795, %v1870, %v1869
      %v1872 = vperm.slane %v1704, %v260
      %v1873 = vperm.slane %v1706, %v1793
      %v1874 = vsel %vm1795, %v1873, %v1872
      %v1875 = vperm.slane %v1708, %v260
      %v1876 = vperm.slane %v1710, %v1793
      %v1877 = vsel %vm1795, %v1876, %v1875
      %v1878 = vperm.slane %v1712, %v260
      %v1879 = vperm.slane %v1714, %v1793
      %v1880 = vsel %vm1795, %v1879, %v1878
      %v1881 = vperm.slane %v1716, %v260
      %v1882 = vperm.slane %v1718, %v1793
      %v1883 = vsel %vm1795, %v1882, %v1881
      %v1884 = vperm.slane %v1720, %v260
      %v1885 = vperm.slane %v1722, %v1793
      %v1886 = vsel %vm1795, %v1885, %v1884
      %v1887 = vperm.slane %v1724, %v260
      %v1888 = vperm.slane %v1726, %v1793
      %v1889 = vsel %vm1795, %v1888, %v1887
      %vm1890 = vcmask 1041409
      %v1891 = vsel %vm1890, %v1799, %v1796
      %vm1892 = vcmask 1042434
      %v1893 = vsel %vm1892, %v1802, %v1891
      %vm1894 = vcmask 1043459
      %v1895 = vsel %vm1894, %v1805, %v1893
      %vm1896 = vcmask 1044484
      %v1897 = vsel %vm1896, %v1808, %v1895
      %vm1898 = vcmask 1045509
      %v1899 = vsel %vm1898, %v1811, %v1897
      %vm1900 = vcmask 1046534
      %v1901 = vsel %vm1900, %v1814, %v1899
      %vm1902 = vcmask 1047559
      %v1903 = vsel %vm1902, %v1817, %v1901
      %v1904 = vsel %vm1890, %v1823, %v1820
      %v1905 = vsel %vm1892, %v1826, %v1904
      %v1906 = vsel %vm1894, %v1829, %v1905
      %v1907 = vsel %vm1896, %v1832, %v1906
      %v1908 = vsel %vm1898, %v1835, %v1907
      %v1909 = vsel %vm1900, %v1838, %v1908
      %v1910 = vsel %vm1902, %v1841, %v1909
      %v1911 = vsel %vm1890, %v1847, %v1844
      %v1912 = vsel %vm1892, %v1850, %v1911
      %v1913 = vsel %vm1894, %v1853, %v1912
      %v1914 = vsel %vm1896, %v1856, %v1913
      %v1915 = vsel %vm1898, %v1859, %v1914
      %v1916 = vsel %vm1900, %v1862, %v1915
      %v1917 = vsel %vm1902, %v1865, %v1916
      %v1918 = vsel %vm1890, %v1871, %v1868
      %v1919 = vsel %vm1892, %v1874, %v1918
      %v1920 = vsel %vm1894, %v1877, %v1919
      %v1921 = vsel %vm1896, %v1880, %v1920
      %v1922 = vsel %vm1898, %v1883, %v1921
      %v1923 = vsel %vm1900, %v1886, %v1922
      %v1924 = vsel %vm1902, %v1889, %v1923
      %v1929 = vsel %vm1727, %v1903, 0.0
      %v1930 = vsel %vm1727, %v1910, 0.0
      %v1931 = vsel %vm1727, %v1917, 0.0
      %v1932 = vsel %vm1727, %v1924, 0.0
      %vm1933 = vcmask 130048
      %v1934 = vsel %vm1933, %v1929, 0.0
      %v1935 = vsel %vm1933, %v1930, 0.0
      %v1936 = vsel %vm1933, %v1931, 0.0
      %v1937 = vsel %vm1933, %v1932, 0.0
      %1938 = vst [vmem:[%s221] sm:$0xff] %v1934
      %1939 = vst [vmem:[%s221 + $0x8] sm:$0xff] %v1935
      %1940 = vst [vmem:[%s221 + $0x10] sm:$0xff] %v1936
      %1941 = vst [vmem:[%s221 + $0x18] sm:$0xff] %v1937
      %s1942 = smul.u32 4, %s15
      %p1943 = scmp.lt.s32.totalorder %s1942, 7
      %s1944 = scalar_select %p1943, %s1942, 7
      %s1945 = smul.addr %s1944, 8
      %s1946 = scalar_lea.vmem %s4, %s1945
      // Predicated region
      $region37: #{skipgram_forward.1} parent=35 // pred_check
        %p1947 = pneg %p127
      $region38: #{skipgram_forward.1} parent=35 // pred_check_branch
        %1949 = sbr.rel (%p1947) target = $region40
      $region39: #{skipgram_forward.1} parent=35 // pred_region
        %s1950 = smul.u32 4, %s15
      $region40: #{skipgram_forward.1} parent=35 // pred_fallthru
        _
    $region36: #{skipgram_forward.1} parent=5 // pred_fallthru
      _
    %p1951 = scmp.le.s32.totalorder 2, %s10
    // Predicated region
    $region41: #{skipgram_forward.1} parent=5 // pred_check
      %p1952 = pneg %p1951
    $region42: #{skipgram_forward.1} parent=5 // pred_check_branch
      %1954 = sbr.rel (%p1952) target = $region44
    $region43: #{skipgram_forward.1} parent=5 // pred_region
      %s1955 = ssub.s32 %s10, 2
      // Predicated region
      $region45: #{skipgram_forward.1} parent=43 // pred_check
        %p1956 = pneg %p133
      $region46: #{skipgram_forward.1} parent=43 // pred_check_branch
        %1958 = sbr.rel (%p1956) target = $region48
      $region47: #{skipgram_forward.1} parent=43 // pred_region
        %s1959 = smul.u32 4, %s16
        %p1960 = scmp.lt.s32.totalorder %s1959, 7
        %s1961 = scalar_select %p1960, %s1959, 7
        %s1962 = smul.addr %s1961, 8
        %s1963 = scalar_lea.vmem %s4, %s1962
      $region48: #{skipgram_forward.1} parent=43 // pred_fallthru
        _
    $region44: #{skipgram_forward.1} parent=5 // pred_fallthru
      _
  $region6: #{skipgram_forward.1} parent=0 // loop_footer
    %s14 = sadd.s32 1, %s10
  $region7: #{skipgram_forward.1} parent=0 // loop_footer_branch
    %9 = sbr.rel target = $region3
  $region8: #{skipgram_forward.1} parent=0 // loop_exit
    _

</llo_original>
